<compile_context>
chip_gen: v7x
topology: tpu7x:2x2x1
jax: 0.10.0
libtpu: 0.0.40
codegen_flags: <defaults>
</compile_context>

<pallas_src>
import functools
import math

import jax
import jax.numpy as jnp
from jax.experimental import pallas as pl
from jax.experimental.pallas import tpu as pltpu


def _bayes_mlp_softmax_kernel(
    x_ref,
    w1mu_ref, w1sig_ref, w1eps_ref,
    b1mu_ref, b1sig_ref, b1eps_ref,
    w2mu_ref, w2sig_ref, w2eps_ref,
    b2mu_ref, b2sig_ref, b2eps_ref,
    o_ref,
    w1_s, b1_s, w2_s, b2_s,
    *, num_classes):
    # Sample the Bayesian weights via the reparameterization trick once per
    # core-chunk (inner grid index == 0).  They stay resident in per-core VMEM
    # scratch for all batch tiles of that core, matching the module semantics
    # (one weight sample per forward, shared across the whole batch).
    @pl.when(pl.program_id(1) == 0)
    def _sample():
        w1_s[...] = (w1mu_ref[...]
                     + jnp.exp(0.5 * w1sig_ref[...]) * w1eps_ref[...]
                     ).astype(w1_s.dtype)
        w2_s[...] = (w2mu_ref[...]
                     + jnp.exp(0.5 * w2sig_ref[...]) * w2eps_ref[...]
                     ).astype(w2_s.dtype)
        b1_s[...] = b1mu_ref[...] + jnp.exp(0.5 * b1sig_ref[...]) * b1eps_ref[...]
        b2_s[...] = b2mu_ref[...] + jnp.exp(0.5 * b2sig_ref[...]) * b2eps_ref[...]

    # encoder: z = relu(x @ W1 + b1)   (MXU matmul, f32 accumulation)
    z = jnp.dot(x_ref[...], w1_s[...], preferred_element_type=jnp.float32)
    z = jnp.maximum(z + b1_s[...], 0.0)

    # head: y = z @ W2 + b2
    y = jnp.dot(z.astype(w2_s.dtype), w2_s[...],
                preferred_element_type=jnp.float32)
    y = y + b2_s[...]

    # mask the zero-padded class lanes, then numerically-stable softmax (f32)
    col = jax.lax.broadcasted_iota(jnp.int32, y.shape, 1)
    y = jnp.where(col < num_classes, y, -1e30)
    y = y - jnp.max(y, axis=-1, keepdims=True)
    e = jnp.exp(y)
    inv = pl.reciprocal(jnp.sum(e, axis=-1, keepdims=True), approx=True)
    o_ref[...] = (e * inv).astype(o_ref.dtype)


def _round_up(x, m):
    return ((x + m - 1) // m) * m


def _pad_to(a, shape):
    return jnp.pad(a, [(0, t - s) for s, t in zip(a.shape, shape)])


def discriminative_forward(x_flat,
                           W1_mu, W1_sigma, b1_mu, b1_sigma,
                           W2_mu, W2_sigma, b2_mu, b2_sigma,
                           W1_eps, b1_eps, W2_eps, b2_eps,
                           *, compute_dtype=jnp.bfloat16, tile_b=128):
    """Fused Bayesian MLP + softmax forward.

    x_flat: (B, D) f32.  W*_{mu,sigma,eps}: (in, out) f32.  b*_{mu,sigma,eps}: (out,) f32.
    Returns probs: (B, num_classes) f32.
    """
    B, D = x_flat.shape
    hid = W1_mu.shape[1]
    num_classes = W2_mu.shape[1]

    hid_p = _round_up(hid, 128)           # lane-dense hidden dim
    out_p = _round_up(num_classes, 128)   # lane-dense output (full-width vst)

    # Batch tiling: sublane-pad (8 rows f32, 16 rows bf16), tile up to tile_b rows.
    sub = 8 * (4 // jnp.dtype(compute_dtype).itemsize)
    tb = min(_round_up(tile_b, sub), _round_up(B, sub))
    b_pad = _round_up(B, tb)
    num_tiles = b_pad // tb
    core_split = 2 if num_tiles % 2 == 0 else 1   # megacore (v7x) batch split
    tiles_per_core = num_tiles // core_split

    xp = _pad_to(x_flat, (b_pad, D)).astype(compute_dtype)
    w1mu = _pad_to(W1_mu, (D, hid_p))
    w1sig = _pad_to(W1_sigma, (D, hid_p))
    w1eps = _pad_to(W1_eps, (D, hid_p))
    b1mu = _pad_to(b1_mu.reshape(1, hid), (1, hid_p))
    b1sig = _pad_to(b1_sigma.reshape(1, hid), (1, hid_p))
    b1eps = _pad_to(b1_eps.reshape(1, hid), (1, hid_p))
    w2mu = _pad_to(W2_mu, (hid_p, out_p))
    w2sig = _pad_to(W2_sigma, (hid_p, out_p))
    w2eps = _pad_to(W2_eps, (hid_p, out_p))
    b2mu = _pad_to(b2_mu.reshape(1, num_classes), (1, out_p))
    b2sig = _pad_to(b2_sigma.reshape(1, num_classes), (1, out_p))
    b2eps = _pad_to(b2_eps.reshape(1, num_classes), (1, out_p))

    def resident(shape):   # DMA'd once, stays in VMEM across all batch tiles
        return pl.BlockSpec(shape, lambda c, t: (0, 0))

    x_spec = pl.BlockSpec((tb, D), lambda c, t: (c * tiles_per_core + t, 0))
    o_spec = pl.BlockSpec((tb, out_p), lambda c, t: (c * tiles_per_core + t, 0))

    kernel = functools.partial(_bayes_mlp_softmax_kernel,
                               num_classes=num_classes)

    out = pl.pallas_call(
        kernel,
        out_shape=jax.ShapeDtypeStruct((b_pad, out_p), jnp.float32),
        grid=(core_split, tiles_per_core),
        in_specs=[
            x_spec,
            resident((D, hid_p)), resident((D, hid_p)), resident((D, hid_p)),
            resident((1, hid_p)), resident((1, hid_p)), resident((1, hid_p)),
            resident((hid_p, out_p)), resident((hid_p, out_p)), resident((hid_p, out_p)),
            resident((1, out_p)), resident((1, out_p)), resident((1, out_p)),
        ],
        out_specs=o_spec,
        scratch_shapes=[
            pltpu.VMEM((D, hid_p), compute_dtype),      # sampled W1
            pltpu.VMEM((1, hid_p), jnp.float32),        # sampled b1
            pltpu.VMEM((hid_p, out_p), compute_dtype),  # sampled W2
            pltpu.VMEM((1, out_p), jnp.float32),        # sampled b2
        ],
        compiler_params=pltpu.CompilerParams(
            dimension_semantics=("parallel", "arbitrary"),
        ),
    )(xp, w1mu, w1sig, w1eps, b1mu, b1sig, b1eps,
      w2mu, w2sig, w2eps, b2mu, b2sig, b2eps)

    return out[:B, :num_classes]


def init_bayesian_layer(key, input_dim, output_dim):
    """Matches BayesianLayer.__init__ parameter distributions (deterministic via key)."""
    k = 1.0 / input_dim
    sk = math.sqrt(k)
    k1, k2, k3, k4 = jax.random.split(key, 4)
    W_mu = jax.random.uniform(k1, (input_dim, output_dim), jnp.float32) * 2 * sk - sk
    b_mu = jax.random.uniform(k2, (output_dim,), jnp.float32) * 2 * sk - sk
    W_sigma = jax.random.normal(k3, (input_dim, output_dim), jnp.float32) * 0.1 - 6.0
    b_sigma = jax.random.normal(k4, (output_dim,), jnp.float32) * 0.1 - 6.0
    return W_mu, b_mu, W_sigma, b_sigma


if __name__ == "__main__":
    # Small, module-consistent shapes: image input (B=2, C=4, 16, 16) -> D=1024.
    B, C, H, W = 2, 4, 16, 16
    input_dim = C * H * W        # 1024
    hidden_dim = 32
    output_dim = 10

    root = jax.random.PRNGKey(0)
    k_x, k_enc, k_head, k_eps = jax.random.split(root, 4)

    # Input (NCHW, flattened like torch .view(batch_size, -1)).
    x = jax.random.normal(k_x, (B, C, H, W), jnp.float32)
    x_flat = x.reshape(B, -1)

    # Deterministic parameter init matching BayesianLayer.__init__.
    W1_mu, b1_mu, W1_sigma, b1_sigma = init_bayesian_layer(k_enc, input_dim, hidden_dim)
    W2_mu, b2_mu, W2_sigma, b2_sigma = init_bayesian_layer(k_head, hidden_dim, output_dim)

    # eps ~ N(0,1) (the torch.randn_like draws of BayesianLayer.forward), drawn
    # in the wrapper with jax.random so the kernel output is deterministically
    # checkable; the reparameterization math itself is fused in-kernel.
    kw1, kb1, kw2, kb2 = jax.random.split(k_eps, 4)
    W1_eps = jax.random.normal(kw1, W1_mu.shape, jnp.float32)
    b1_eps = jax.random.normal(kb1, b1_mu.shape, jnp.float32)
    W2_eps = jax.random.normal(kw2, W2_mu.shape, jnp.float32)
    b2_eps = jax.random.normal(kb2, b2_mu.shape, jnp.float32)

    forward = jax.jit(discriminative_forward,
                      static_argnames=("compute_dtype", "tile_b"))
    probs = forward(
        x_flat,
        W1_mu, W1_sigma, b1_mu, b1_sigma,
        W2_mu, W2_sigma, b2_mu, b2_sigma,
        W1_eps, b1_eps, W2_eps, b2_eps,
        compute_dtype=jnp.bfloat16)
    jax.block_until_ready(probs)

    # Pure-JAX reference with the same reparameterized weights and the same
    # bf16-input / f32-accumulate matmul precision as the kernel.
    cd = jnp.bfloat16
    W1 = W1_mu + jnp.exp(0.5 * W1_sigma) * W1_eps
    b1 = b1_mu + jnp.exp(0.5 * b1_sigma) * b1_eps
    W2 = W2_mu + jnp.exp(0.5 * W2_sigma) * W2_eps
    b2 = b2_mu + jnp.exp(0.5 * b2_sigma) * b2_eps
    z_ref = jnp.maximum(
        jnp.dot(x_flat.astype(cd), W1.astype(cd),
                preferred_element_type=jnp.float32) + b1, 0.0)
    y_ref = jnp.dot(z_ref.astype(cd), W2.astype(cd),
                    preferred_element_type=jnp.float32) + b2
    probs_ref = jax.nn.softmax(y_ref, axis=-1)

    assert probs.shape == (B, output_dim)
    # Tolerance covers bf16 matmul accumulation-order differences and the
    # approximate (EUP) reciprocal used for the softmax normalization.
    max_err = float(jnp.max(jnp.abs(probs - probs_ref)))
    assert jnp.allclose(probs, probs_ref, atol=5e-3, rtol=5e-3), max_err
    assert jnp.allclose(jnp.sum(probs, axis=-1), 1.0, atol=5e-3)

    print("KERNEL_OK")
</pallas_src>

<mosaic_0001>
module attributes {stable_mosaic.version = 11 : i64} {
  func.func @_bayes_mlp_softmax_kernel(%arg0: i32, %arg1: i32, %arg2: memref<16x1024xbf16, #tpu.memory_space<vmem>>, %arg3: memref<1024x128xf32, #tpu.memory_space<vmem>>, %arg4: memref<1024x128xf32, #tpu.memory_space<vmem>>, %arg5: memref<1024x128xf32, #tpu.memory_space<vmem>>, %arg6: memref<1x128xf32, #tpu.memory_space<vmem>>, %arg7: memref<1x128xf32, #tpu.memory_space<vmem>>, %arg8: memref<1x128xf32, #tpu.memory_space<vmem>>, %arg9: memref<128x128xf32, #tpu.memory_space<vmem>>, %arg10: memref<128x128xf32, #tpu.memory_space<vmem>>, %arg11: memref<128x128xf32, #tpu.memory_space<vmem>>, %arg12: memref<1x128xf32, #tpu.memory_space<vmem>>, %arg13: memref<1x128xf32, #tpu.memory_space<vmem>>, %arg14: memref<1x128xf32, #tpu.memory_space<vmem>>, %arg15: memref<16x128xf32, #tpu.memory_space<vmem>>, %arg16: memref<1024x128xbf16, #tpu.memory_space<vmem>>, %arg17: memref<1x128xf32, #tpu.memory_space<vmem>>, %arg18: memref<128x128xbf16, #tpu.memory_space<vmem>>, %arg19: memref<1x128xf32, #tpu.memory_space<vmem>>) attributes {dimension_semantics = [#tpu.dimension_semantics<parallel>, #tpu.dimension_semantics<arbitrary>], iteration_bounds = array<i64: 1, 1>, scalar_prefetch = 0 : i64, scratch_operands = 4 : i64, tpu.core_type = #tpu.core_type<tc>, window_params = [{transform_indices = @transform_0, window_bounds = array<i64: 16, 1024>}, {pipeline_mode = #tpu.pipeline_mode<synchronous>, transform_indices = @transform_1, window_bounds = array<i64: 1024, 128>}, {pipeline_mode = #tpu.pipeline_mode<synchronous>, transform_indices = @transform_2, window_bounds = array<i64: 1024, 128>}, {pipeline_mode = #tpu.pipeline_mode<synchronous>, transform_indices = @transform_3, window_bounds = array<i64: 1024, 128>}, {pipeline_mode = #tpu.pipeline_mode<synchronous>, transform_indices = @transform_4, window_bounds = array<i64: 1, 128>}, {pipeline_mode = #tpu.pipeline_mode<synchronous>, transform_indices = @transform_5, window_bounds = array<i64: 1, 128>}, {pipeline_mode = #tpu.pipeline_mode<synchronous>, transform_indices = @transform_6, window_bounds = array<i64: 1, 128>}, {pipeline_mode = #tpu.pipeline_mode<synchronous>, transform_indices = @transform_7, window_bounds = array<i64: 128, 128>}, {pipeline_mode = #tpu.pipeline_mode<synchronous>, transform_indices = @transform_8, window_bounds = array<i64: 128, 128>}, {pipeline_mode = #tpu.pipeline_mode<synchronous>, transform_indices = @transform_9, window_bounds = array<i64: 128, 128>}, {pipeline_mode = #tpu.pipeline_mode<synchronous>, transform_indices = @transform_10, window_bounds = array<i64: 1, 128>}, {pipeline_mode = #tpu.pipeline_mode<synchronous>, transform_indices = @transform_11, window_bounds = array<i64: 1, 128>}, {pipeline_mode = #tpu.pipeline_mode<synchronous>, transform_indices = @transform_12, window_bounds = array<i64: 1, 128>}, {transform_indices = @transform_13, window_bounds = array<i64: 16, 128>}]} {
    %c0_i32 = arith.constant 0 : i32
    %0 = arith.cmpi eq, %arg1, %c0_i32 : i32
    %1 = arith.extui %0 : i1 to i32
    %c0_i32_0 = arith.constant 0 : i32
    %2 = arith.cmpi ne, %1, %c0_i32_0 : i32
    scf.if %2 {
      %c0_17 = arith.constant 0 : index
      %c0_18 = arith.constant 0 : index
      %33 = vector.load %arg3[%c0_17, %c0_18] : memref<1024x128xf32, #tpu.memory_space<vmem>>, vector<1024x128xf32>
      %c0_19 = arith.constant 0 : index
      %c0_20 = arith.constant 0 : index
      %34 = vector.load %arg4[%c0_19, %c0_20] : memref<1024x128xf32, #tpu.memory_space<vmem>>, vector<1024x128xf32>
      %cst_21 = arith.constant 5.000000e-01 : f32
      %35 = vector.broadcast %cst_21 : f32 to vector<1024x128xf32>
      %36 = arith.mulf %35, %34 : vector<1024x128xf32>
      %37 = math.exp %36 : vector<1024x128xf32>
      %c0_22 = arith.constant 0 : index
      %c0_23 = arith.constant 0 : index
      %38 = vector.load %arg5[%c0_22, %c0_23] : memref<1024x128xf32, #tpu.memory_space<vmem>>, vector<1024x128xf32>
      %39 = arith.mulf %37, %38 : vector<1024x128xf32>
      %40 = arith.addf %33, %39 : vector<1024x128xf32>
      %41 = arith.truncf %40 : vector<1024x128xf32> to vector<1024x128xbf16>
      %c0_24 = arith.constant 0 : index
      %c0_25 = arith.constant 0 : index
      %42 = vector.load %arg16[%c0_24, %c0_25] : memref<1024x128xbf16, #tpu.memory_space<vmem>>, vector<1024x128xbf16>
      tpu.vector_store %arg16[%c0_24, %c0_25], %41 {strides = array<i32>} : memref<1024x128xbf16, #tpu.memory_space<vmem>>, vector<1024x128xbf16>,
      %c0_26 = arith.constant 0 : index
      %c0_27 = arith.constant 0 : index
      %43 = vector.load %arg9[%c0_26, %c0_27] : memref<128x128xf32, #tpu.memory_space<vmem>>, vector<128x128xf32>
      %c0_28 = arith.constant 0 : index
      %c0_29 = arith.constant 0 : index
      %44 = vector.load %arg10[%c0_28, %c0_29] : memref<128x128xf32, #tpu.memory_space<vmem>>, vector<128x128xf32>
      %cst_30 = arith.constant 5.000000e-01 : f32
      %45 = vector.broadcast %cst_30 : f32 to vector<128x128xf32>
      %46 = arith.mulf %45, %44 : vector<128x128xf32>
      %47 = math.exp %46 : vector<128x128xf32>
      %c0_31 = arith.constant 0 : index
      %c0_32 = arith.constant 0 : index
      %48 = vector.load %arg11[%c0_31, %c0_32] : memref<128x128xf32, #tpu.memory_space<vmem>>, vector<128x128xf32>
      %49 = arith.mulf %47, %48 : vector<128x128xf32>
      %50 = arith.addf %43, %49 : vector<128x128xf32>
      %51 = arith.truncf %50 : vector<128x128xf32> to vector<128x128xbf16>
      %c0_33 = arith.constant 0 : index
      %c0_34 = arith.constant 0 : index
      %52 = vector.load %arg18[%c0_33, %c0_34] : memref<128x128xbf16, #tpu.memory_space<vmem>>, vector<128x128xbf16>
      tpu.vector_store %arg18[%c0_33, %c0_34], %51 {strides = array<i32>} : memref<128x128xbf16, #tpu.memory_space<vmem>>, vector<128x128xbf16>,
      %c0_35 = arith.constant 0 : index
      %c0_36 = arith.constant 0 : index
      %53 = vector.load %arg6[%c0_35, %c0_36] : memref<1x128xf32, #tpu.memory_space<vmem>>, vector<1x128xf32>
      %c0_37 = arith.constant 0 : index
      %c0_38 = arith.constant 0 : index
      %54 = vector.load %arg7[%c0_37, %c0_38] : memref<1x128xf32, #tpu.memory_space<vmem>>, vector<1x128xf32>
      %cst_39 = arith.constant 5.000000e-01 : f32
      %55 = vector.broadcast %cst_39 : f32 to vector<1x128xf32>
      %56 = arith.mulf %55, %54 : vector<1x128xf32>
      %57 = math.exp %56 : vector<1x128xf32>
      %c0_40 = arith.constant 0 : index
      %c0_41 = arith.constant 0 : index
      %58 = vector.load %arg8[%c0_40, %c0_41] : memref<1x128xf32, #tpu.memory_space<vmem>>, vector<1x128xf32>
      %59 = arith.mulf %57, %58 : vector<1x128xf32>
      %60 = arith.addf %53, %59 : vector<1x128xf32>
      %c0_42 = arith.constant 0 : index
      %c0_43 = arith.constant 0 : index
      %61 = vector.load %arg17[%c0_42, %c0_43] : memref<1x128xf32, #tpu.memory_space<vmem>>, vector<1x128xf32>
      tpu.vector_store %arg17[%c0_42, %c0_43], %60 {strides = array<i32>} : memref<1x128xf32, #tpu.memory_space<vmem>>, vector<1x128xf32>,
      %c0_44 = arith.constant 0 : index
      %c0_45 = arith.constant 0 : index
      %62 = vector.load %arg12[%c0_44, %c0_45] : memref<1x128xf32, #tpu.memory_space<vmem>>, vector<1x128xf32>
      %c0_46 = arith.constant 0 : index
      %c0_47 = arith.constant 0 : index
      %63 = vector.load %arg13[%c0_46, %c0_47] : memref<1x128xf32, #tpu.memory_space<vmem>>, vector<1x128xf32>
      %cst_48 = arith.constant 5.000000e-01 : f32
      %64 = vector.broadcast %cst_48 : f32 to vector<1x128xf32>
      %65 = arith.mulf %64, %63 : vector<1x128xf32>
      %66 = math.exp %65 : vector<1x128xf32>
      %c0_49 = arith.constant 0 : index
      %c0_50 = arith.constant 0 : index
      %67 = vector.load %arg14[%c0_49, %c0_50] : memref<1x128xf32, #tpu.memory_space<vmem>>, vector<1x128xf32>
      %68 = arith.mulf %66, %67 : vector<1x128xf32>
      %69 = arith.addf %62, %68 : vector<1x128xf32>
      %c0_51 = arith.constant 0 : index
      %c0_52 = arith.constant 0 : index
      %70 = vector.load %arg19[%c0_51, %c0_52] : memref<1x128xf32, #tpu.memory_space<vmem>>, vector<1x128xf32>
      tpu.vector_store %arg19[%c0_51, %c0_52], %69 {strides = array<i32>} : memref<1x128xf32, #tpu.memory_space<vmem>>, vector<1x128xf32>,
    } else {
    }
    %c0 = arith.constant 0 : index
    %c0_1 = arith.constant 0 : index
    %3 = vector.load %arg2[%c0, %c0_1] : memref<16x1024xbf16, #tpu.memory_space<vmem>>, vector<16x1024xbf16>
    %c0_2 = arith.constant 0 : index
    %c0_3 = arith.constant 0 : index
    %4 = vector.load %arg16[%c0_2, %c0_3] : memref<1024x128xbf16, #tpu.memory_space<vmem>>, vector<1024x128xbf16>
    %cst = arith.constant dense<0.000000e+00> : vector<16x128xf32>
    %5 = tpu.matmul %3, %4, %cst {dimension_numbers = #tpu.dot_dimension_numbers<[1], [0], [0], [1], [0, 0, 1, 1], [], []>} : vector<16x1024xbf16>, vector<1024x128xbf16>, vector<16x128xf32> -> vector<16x128xf32>
    %c0_4 = arith.constant 0 : index
    %c0_5 = arith.constant 0 : index
    %6 = vector.load %arg17[%c0_4, %c0_5] : memref<1x128xf32, #tpu.memory_space<vmem>>, vector<1x128xf32>
    %7 = vector.broadcast %6 : vector<1x128xf32> to vector<16x128xf32>
    %8 = arith.addf %5, %7 : vector<16x128xf32>
    %cst_6 = arith.constant 0.000000e+00 : f32
    %9 = vector.broadcast %cst_6 : f32 to vector<16x128xf32>
    %10 = arith.maximumf %8, %9 : vector<16x128xf32>
    %11 = arith.truncf %10 : vector<16x128xf32> to vector<16x128xbf16>
    %c0_7 = arith.constant 0 : index
    %c0_8 = arith.constant 0 : index
    %12 = vector.load %arg18[%c0_7, %c0_8] : memref<128x128xbf16, #tpu.memory_space<vmem>>, vector<128x128xbf16>
    %cst_9 = arith.constant dense<0.000000e+00> : vector<16x128xf32>
    %13 = tpu.matmul %11, %12, %cst_9 {dimension_numbers = #tpu.dot_dimension_numbers<[1], [0], [0], [1], [0, 0, 1, 1], [], []>} : vector<16x128xbf16>, vector<128x128xbf16>, vector<16x128xf32> -> vector<16x128xf32>
    %c0_10 = arith.constant 0 : index
    %c0_11 = arith.constant 0 : index
    %14 = vector.load %arg19[%c0_10, %c0_11] : memref<1x128xf32, #tpu.memory_space<vmem>>, vector<1x128xf32>
    %15 = vector.broadcast %14 : vector<1x128xf32> to vector<16x128xf32>
    %16 = arith.addf %13, %15 : vector<16x128xf32>
    %17 = tpu.iota {dimensions = array<i32: 1>} : vector<16x128xi32>
    %c10_i32 = arith.constant 10 : i32
    %18 = vector.broadcast %c10_i32 : i32 to vector<16x128xi32>
    %19 = arith.cmpi slt, %17, %18 : vector<16x128xi32>
    %cst_12 = arith.constant -1.000000e+30 : f32
    %20 = vector.broadcast %cst_12 : f32 to vector<16x128xf32>
    %21 = arith.select %19, %16, %20 : vector<16x128xi1>, vector<16x128xf32>
    %cst_13 = arith.constant dense<0xFF800000> : vector<16xf32>
    %22 = vector.multi_reduction <maximumf>, %21, %cst_13 [1] : vector<16x128xf32> to vector<16xf32>
    %23 = vector.shape_cast %22 : vector<16xf32> to vector<16x1xf32>
    %24 = vector.broadcast %23 : vector<16x1xf32> to vector<16x128xf32>
    %25 = arith.subf %21, %24 : vector<16x128xf32>
    %26 = math.exp %25 : vector<16x128xf32>
    %cst_14 = arith.constant dense<0.000000e+00> : vector<16xf32>
    %27 = vector.multi_reduction <add>, %26, %cst_14 [1] : vector<16x128xf32> to vector<16xf32>
    %28 = vector.shape_cast %27 : vector<16xf32> to vector<16x1xf32>
    %29 = tpu.reciprocal %28 {approx = true} : vector<16x1xf32> -> vector<16x1xf32>
    %30 = vector.broadcast %29 : vector<16x1xf32> to vector<16x128xf32>
    %31 = arith.mulf %26, %30 : vector<16x128xf32>
    %c0_15 = arith.constant 0 : index
    %c0_16 = arith.constant 0 : index
    %32 = vector.load %arg15[%c0_15, %c0_16] : memref<16x128xf32, #tpu.memory_space<vmem>>, vector<16x128xf32>
    tpu.vector_store %arg15[%c0_15, %c0_16], %31 {strides = array<i32>} : memref<16x128xf32, #tpu.memory_space<vmem>>, vector<16x128xf32>,
    return
  }
  func.func @transform_0(%arg0: i32, %arg1: i32) -> (i32, i32) {
    %c1_i32 = arith.constant 1 : i32
    %0 = arith.muli %arg0, %c1_i32 : i32
    %1 = arith.addi %0, %arg1 : i32
    %c0_i32 = arith.constant 0 : i32
    %c0_i32_0 = arith.constant 0 : i32
    return %1, %c0_i32 : i32, i32
  }
  func.func @transform_1(%arg0: i32, %arg1: i32) -> (i32, i32) {
    %c0_i32 = arith.constant 0 : i32
    %c0_i32_0 = arith.constant 0 : i32
    %c0_i32_1 = arith.constant 0 : i32
    return %c0_i32, %c0_i32_0 : i32, i32
  }
  func.func @transform_2(%arg0: i32, %arg1: i32) -> (i32, i32) {
    %c0_i32 = arith.constant 0 : i32
    %c0_i32_0 = arith.constant 0 : i32
    %c0_i32_1 = arith.constant 0 : i32
    return %c0_i32, %c0_i32_0 : i32, i32
  }
  func.func @transform_3(%arg0: i32, %arg1: i32) -> (i32, i32) {
    %c0_i32 = arith.constant 0 : i32
    %c0_i32_0 = arith.constant 0 : i32
    %c0_i32_1 = arith.constant 0 : i32
    return %c0_i32, %c0_i32_0 : i32, i32
  }
  func.func @transform_4(%arg0: i32, %arg1: i32) -> (i32, i32) {
    %c0_i32 = arith.constant 0 : i32
    %c0_i32_0 = arith.constant 0 : i32
    %c0_i32_1 = arith.constant 0 : i32
    return %c0_i32, %c0_i32_0 : i32, i32
  }
  func.func @transform_5(%arg0: i32, %arg1: i32) -> (i32, i32) {
    %c0_i32 = arith.constant 0 : i32
    %c0_i32_0 = arith.constant 0 : i32
    %c0_i32_1 = arith.constant 0 : i32
    return %c0_i32, %c0_i32_0 : i32, i32
  }
  func.func @transform_6(%arg0: i32, %arg1: i32) -> (i32, i32) {
    %c0_i32 = arith.constant 0 : i32
    %c0_i32_0 = arith.constant 0 : i32
    %c0_i32_1 = arith.constant 0 : i32
    return %c0_i32, %c0_i32_0 : i32, i32
  }
  func.func @transform_7(%arg0: i32, %arg1: i32) -> (i32, i32) {
    %c0_i32 = arith.constant 0 : i32
    %c0_i32_0 = arith.constant 0 : i32
    %c0_i32_1 = arith.constant 0 : i32
    return %c0_i32, %c0_i32_0 : i32, i32
  }
  func.func @transform_8(%arg0: i32, %arg1: i32) -> (i32, i32) {
    %c0_i32 = arith.constant 0 : i32
    %c0_i32_0 = arith.constant 0 : i32
    %c0_i32_1 = arith.constant 0 : i32
    return %c0_i32, %c0_i32_0 : i32, i32
  }
  func.func @transform_9(%arg0: i32, %arg1: i32) -> (i32, i32) {
    %c0_i32 = arith.constant 0 : i32
    %c0_i32_0 = arith.constant 0 : i32
    %c0_i32_1 = arith.constant 0 : i32
    return %c0_i32, %c0_i32_0 : i32, i32
  }
  func.func @transform_10(%arg0: i32, %arg1: i32) -> (i32, i32) {
    %c0_i32 = arith.constant 0 : i32
    %c0_i32_0 = arith.constant 0 : i32
    %c0_i32_1 = arith.constant 0 : i32
    return %c0_i32, %c0_i32_0 : i32, i32
  }
  func.func @transform_11(%arg0: i32, %arg1: i32) -> (i32, i32) {
    %c0_i32 = arith.constant 0 : i32
    %c0_i32_0 = arith.constant 0 : i32
    %c0_i32_1 = arith.constant 0 : i32
    return %c0_i32, %c0_i32_0 : i32, i32
  }
  func.func @transform_12(%arg0: i32, %arg1: i32) -> (i32, i32) {
    %c0_i32 = arith.constant 0 : i32
    %c0_i32_0 = arith.constant 0 : i32
    %c0_i32_1 = arith.constant 0 : i32
    return %c0_i32, %c0_i32_0 : i32, i32
  }
  func.func @transform_13(%arg0: i32, %arg1: i32) -> (i32, i32) {
    %c1_i32 = arith.constant 1 : i32
    %0 = arith.muli %arg0, %c1_i32 : i32
    %1 = arith.addi %0, %arg1 : i32
    %c0_i32 = arith.constant 0 : i32
    %c0_i32_0 = arith.constant 0 : i32
    return %1, %c0_i32 : i32, i32
  }
}

</mosaic_0001>

<llo_original>
// kernel: discriminative_forward.1
$region0: #{discriminative_forward.1}
  #allocation0 [shape = 'u32[]', space=smem, size = 0x4, offset = 0x4, fixed_abs, tag = 'smem constant byte address 0x4 - core index']
  #allocation1 [shape = 'u32[144,128]{1,0:T(1,128)}', space=vmem, size = 0x12000, scoped, tag = 'internal scratch']
  #allocation2 [shape = 'bf16[1024,128]{1,0:T(16,128)(2,1)}', space=vmem, size = 0x40000, scoped, tag = 'scratch operand']
  #allocation3 [shape = 'f32[1,128]{1,0:T(1,128)}', space=vmem, size = 0x200, scoped, tag = 'scratch operand']
  #allocation4 [shape = 'bf16[128,128]{1,0:T(16,128)(2,1)}', space=vmem, size = 0x8000, scoped, tag = 'scratch operand']
  #allocation5 [shape = 'f32[1,128]{1,0:T(1,128)}', space=vmem, size = 0x200, scoped, tag = 'scratch operand']
  %s0 = inlined_call_operand.vmem [shape: bf16[16,1024], index: 0, kind: input, shape index: {}]
  %s1 = inlined_call_operand.vmem [shape: f32[1024,128], index: 1, kind: input, shape index: {}]
  %s2 = inlined_call_operand.vmem [shape: f32[1024,128], index: 2, kind: input, shape index: {}]
  %s3 = inlined_call_operand.vmem [shape: f32[1024,128], index: 3, kind: input, shape index: {}]
  %s4 = inlined_call_operand.vmem [shape: f32[1,128], index: 4, kind: input, shape index: {}]
  %s5 = inlined_call_operand.vmem [shape: f32[1,128], index: 5, kind: input, shape index: {}]
  %s6 = inlined_call_operand.vmem [shape: f32[1,128], index: 6, kind: input, shape index: {}]
  %s7 = inlined_call_operand.vmem [shape: f32[128,128], index: 7, kind: input, shape index: {}]
  %s8 = inlined_call_operand.vmem [shape: f32[128,128], index: 8, kind: input, shape index: {}]
  %s9 = inlined_call_operand.vmem [shape: f32[128,128], index: 9, kind: input, shape index: {}]
  %s10 = inlined_call_operand.vmem [shape: f32[1,128], index: 10, kind: input, shape index: {}]
  %s11 = inlined_call_operand.vmem [shape: f32[1,128], index: 11, kind: input, shape index: {}]
  %s12 = inlined_call_operand.vmem [shape: f32[1,128], index: 12, kind: input, shape index: {}]
  %s13 = inlined_call_operand.vmem [shape: f32[16,128], index: 13, kind: output, shape index: {}]
  %s14 = sld [smem:[#allocation0]]
  $region66: #{discriminative_forward.1} parent=0
    _
  %s16 = ssub.s32 1, %s14
  %s17 = scalar_select 0, %s16, %s14
  // Predicated region
  $region2: #{discriminative_forward.1} parent=0 // pred_check
    _
  $region3: #{discriminative_forward.1} parent=0 // pred_check_branch
    %19 = sbr.rel (0) target = $region5
  $region4: #{discriminative_forward.1} parent=0 // pred_region
    %s20 = sadd.s32 0, 0
    %s21 = smul.u32 2, %s20
    %p22 = scmp.lt.s32.totalorder %s21, 1
    %s23 = scalar_select %p22, %s21, 1
    %s24 = smul.addr %s23, 8
    %s25 = smul.addr %s24, 4
    %s26 = scalar_lea.vmem %s0, %s25
    %s27 = sadd.s32 0, 0
    %s28 = smul.u32 2, %s27
  $region5: #{discriminative_forward.1} parent=0 // pred_fallthru
    _
  // Predicated region
  $region6: #{discriminative_forward.1} parent=0 // pred_check
    _
  $region7: #{discriminative_forward.1} parent=0 // pred_check_branch
    %30 = sbr.rel (0) target = $region9
  $region8: #{discriminative_forward.1} parent=0 // pred_region
    _
  $region9: #{discriminative_forward.1} parent=0 // pred_fallthru
    _
  // Predicated region
  $region10: #{discriminative_forward.1} parent=0 // pred_check
    _
  $region11: #{discriminative_forward.1} parent=0 // pred_check_branch
    %32 = sbr.rel (0) target = $region13
  $region12: #{discriminative_forward.1} parent=0 // pred_region
    _
  $region13: #{discriminative_forward.1} parent=0 // pred_fallthru
    _
  // Predicated region
  $region14: #{discriminative_forward.1} parent=0 // pred_check
    _
  $region15: #{discriminative_forward.1} parent=0 // pred_check_branch
    %34 = sbr.rel (0) target = $region17
  $region16: #{discriminative_forward.1} parent=0 // pred_region
    _
  $region17: #{discriminative_forward.1} parent=0 // pred_fallthru
    _
  // Predicated region
  $region18: #{discriminative_forward.1} parent=0 // pred_check
    _
  $region19: #{discriminative_forward.1} parent=0 // pred_check_branch
    %36 = sbr.rel (0) target = $region21
  $region20: #{discriminative_forward.1} parent=0 // pred_region
    _
  $region21: #{discriminative_forward.1} parent=0 // pred_fallthru
    _
  // Predicated region
  $region22: #{discriminative_forward.1} parent=0 // pred_check
    _
  $region23: #{discriminative_forward.1} parent=0 // pred_check_branch
    %38 = sbr.rel (0) target = $region25
  $region24: #{discriminative_forward.1} parent=0 // pred_region
    _
  $region25: #{discriminative_forward.1} parent=0 // pred_fallthru
    _
  // Predicated region
  $region26: #{discriminative_forward.1} parent=0 // pred_check
    _
  $region27: #{discriminative_forward.1} parent=0 // pred_check_branch
    %40 = sbr.rel (0) target = $region29
  $region28: #{discriminative_forward.1} parent=0 // pred_region
    _
  $region29: #{discriminative_forward.1} parent=0 // pred_fallthru
    _
  // Predicated region
  $region30: #{discriminative_forward.1} parent=0 // pred_check
    _
  $region31: #{discriminative_forward.1} parent=0 // pred_check_branch
    %42 = sbr.rel (0) target = $region33
  $region32: #{discriminative_forward.1} parent=0 // pred_region
    _
  $region33: #{discriminative_forward.1} parent=0 // pred_fallthru
    _
  // Predicated region
  $region34: #{discriminative_forward.1} parent=0 // pred_check
    _
  $region35: #{discriminative_forward.1} parent=0 // pred_check_branch
    %44 = sbr.rel (0) target = $region37
  $region36: #{discriminative_forward.1} parent=0 // pred_region
    _
  $region37: #{discriminative_forward.1} parent=0 // pred_fallthru
    _
  // Predicated region
  $region38: #{discriminative_forward.1} parent=0 // pred_check
    _
  $region39: #{discriminative_forward.1} parent=0 // pred_check_branch
    %46 = sbr.rel (0) target = $region41
  $region40: #{discriminative_forward.1} parent=0 // pred_region
    _
  $region41: #{discriminative_forward.1} parent=0 // pred_fallthru
    _
  // Predicated region
  $region42: #{discriminative_forward.1} parent=0 // pred_check
    _
  $region43: #{discriminative_forward.1} parent=0 // pred_check_branch
    %48 = sbr.rel (0) target = $region45
  $region44: #{discriminative_forward.1} parent=0 // pred_region
    _
  $region45: #{discriminative_forward.1} parent=0 // pred_fallthru
    _
  // Predicated region
  $region46: #{discriminative_forward.1} parent=0 // pred_check
    _
  $region47: #{discriminative_forward.1} parent=0 // pred_check_branch
    %50 = sbr.rel (0) target = $region49
  $region48: #{discriminative_forward.1} parent=0 // pred_region
    _
  $region49: #{discriminative_forward.1} parent=0 // pred_fallthru
    _
  // Predicated region
  $region50: #{discriminative_forward.1} parent=0 // pred_check
    _
  $region51: #{discriminative_forward.1} parent=0 // pred_check_branch
    %52 = sbr.rel (0) target = $region53
  $region52: #{discriminative_forward.1} parent=0 // pred_region
    _
  $region53: #{discriminative_forward.1} parent=0 // pred_fallthru
    _
  %s53 = sadd.s32 0, 0
  %s54 = smul.u32 2, %s53
  %p55 = scmp.lt.s32.totalorder %s54, 1
  %s56 = scalar_select %p55, %s54, 1
  %s57 = smul.addr %s56, 8
  %s58 = smul.addr %s57, 4
  %s59 = scalar_lea.vmem %s0, %s58
  %s60 = sadd.s32 0, 0
  %s61 = smul.u32 2, %s60
  %p62 = scmp.lt.s32.totalorder %s61, 1
  %s63 = scalar_select %p62, %s61, 1
  %s64 = smul.addr %s63, 8
  %s65 = scalar_lea.vmem %s13, %s64
  %s66 = sadd.s32 0, 0
  %s67 = smul.u32 2, %s66
  %p68 = scmp.lt.s32.totalorder %s67, 1
  %s69 = scalar_select %p68, %s67, 1
  %s70 = smul.addr %s69, 8
  %s71 = smul.addr %s70, 4
  %s72 = scalar_lea.vmem %s0, %s71
  %s73 = sadd.s32 0, 0
  %s74 = smul.u32 2, %s73
  %s75 = sadd.s32 0, 0
  %s76 = smul.u32 2, %s75
  %p77 = scmp.lt.s32.totalorder %s76, 1
  %s78 = scalar_select %p77, %s76, 1
  %s79 = smul.addr %s78, 8
  %s80 = scalar_lea.vmem %s13, %s79
  %s81 = sadd.s32 0, 0
  %s82 = smul.u32 2, %s81
  %p84 = scmp.eq.s32.totalorder 0, 0
  // Predicated region
  $region54: #{discriminative_forward.1} parent=0 // pred_check
    %p85 = pneg %p84
  $region55: #{discriminative_forward.1} parent=0 // pred_check_branch
    %87 = sbr.rel (%p85) target = $region57
  $region56: #{discriminative_forward.1} parent=0 // pred_region
    %v88 = vld [vmem:[%s1] sm:$0xff]
    %v89 = vld [vmem:[%s1 + $0x8] sm:$0xff]
    %v90 = vld [vmem:[%s1 + $0x10] sm:$0xff]
    %v91 = vld [vmem:[%s1 + $0x18] sm:$0xff]
    %v92 = vld [vmem:[%s1 + $0x20] sm:$0xff]
    %v93 = vld [vmem:[%s1 + $0x28] sm:$0xff]
    %v94 = vld [vmem:[%s1 + $0x30] sm:$0xff]
    %v95 = vld [vmem:[%s1 + $0x38] sm:$0xff]
    %v96 = vld [vmem:[%s1 + $0x40] sm:$0xff]
    %v97 = vld [vmem:[%s1 + $0x48] sm:$0xff]
    %v98 = vld [vmem:[%s1 + $0x50] sm:$0xff]
    %v99 = vld [vmem:[%s1 + $0x58] sm:$0xff]
    %v100 = vld [vmem:[%s1 + $0x60] sm:$0xff]
    %v101 = vld [vmem:[%s1 + $0x68] sm:$0xff]
    %v102 = vld [vmem:[%s1 + $0x70] sm:$0xff]
    %v103 = vld [vmem:[%s1 + $0x78] sm:$0xff]
    %v104 = vld [vmem:[%s1 + $0x80] sm:$0xff]
    %v105 = vld [vmem:[%s1 + $0x88] sm:$0xff]
    %v106 = vld [vmem:[%s1 + $0x90] sm:$0xff]
    %v107 = vld [vmem:[%s1 + $0x98] sm:$0xff]
    %v108 = vld [vmem:[%s1 + $0xa0] sm:$0xff]
    %v109 = vld [vmem:[%s1 + $0xa8] sm:$0xff]
    %v110 = vld [vmem:[%s1 + $0xb0] sm:$0xff]
    %v111 = vld [vmem:[%s1 + $0xb8] sm:$0xff]
    %v112 = vld [vmem:[%s1 + $0xc0] sm:$0xff]
    %v113 = vld [vmem:[%s1 + $0xc8] sm:$0xff]
    %v114 = vld [vmem:[%s1 + $0xd0] sm:$0xff]
    %v115 = vld [vmem:[%s1 + $0xd8] sm:$0xff]
    %v116 = vld [vmem:[%s1 + $0xe0] sm:$0xff]
    %v117 = vld [vmem:[%s1 + $0xe8] sm:$0xff]
    %v118 = vld [vmem:[%s1 + $0xf0] sm:$0xff]
    %v119 = vld [vmem:[%s1 + $0xf8] sm:$0xff]
    %v120 = vld [vmem:[%s1 + $0x100] sm:$0xff]
    %v121 = vld [vmem:[%s1 + $0x108] sm:$0xff]
    %v122 = vld [vmem:[%s1 + $0x110] sm:$0xff]
    %v123 = vld [vmem:[%s1 + $0x118] sm:$0xff]
    %v124 = vld [vmem:[%s1 + $0x120] sm:$0xff]
    %v125 = vld [vmem:[%s1 + $0x128] sm:$0xff]
    %v126 = vld [vmem:[%s1 + $0x130] sm:$0xff]
    %v127 = vld [vmem:[%s1 + $0x138] sm:$0xff]
    %v128 = vld [vmem:[%s1 + $0x140] sm:$0xff]
    %v129 = vld [vmem:[%s1 + $0x148] sm:$0xff]
    %v130 = vld [vmem:[%s1 + $0x150] sm:$0xff]
    %v131 = vld [vmem:[%s1 + $0x158] sm:$0xff]
    %v132 = vld [vmem:[%s1 + $0x160] sm:$0xff]
    %v133 = vld [vmem:[%s1 + $0x168] sm:$0xff]
    %v134 = vld [vmem:[%s1 + $0x170] sm:$0xff]
    %v135 = vld [vmem:[%s1 + $0x178] sm:$0xff]
    %v136 = vld [vmem:[%s1 + $0x180] sm:$0xff]
    %v137 = vld [vmem:[%s1 + $0x188] sm:$0xff]
    %v138 = vld [vmem:[%s1 + $0x190] sm:$0xff]
    %v139 = vld [vmem:[%s1 + $0x198] sm:$0xff]
    %v140 = vld [vmem:[%s1 + $0x1a0] sm:$0xff]
    %v141 = vld [vmem:[%s1 + $0x1a8] sm:$0xff]
    %v142 = vld [vmem:[%s1 + $0x1b0] sm:$0xff]
    %v143 = vld [vmem:[%s1 + $0x1b8] sm:$0xff]
    %v144 = vld [vmem:[%s1 + $0x1c0] sm:$0xff]
    %v145 = vld [vmem:[%s1 + $0x1c8] sm:$0xff]
    %v146 = vld [vmem:[%s1 + $0x1d0] sm:$0xff]
    %v147 = vld [vmem:[%s1 + $0x1d8] sm:$0xff]
    %v148 = vld [vmem:[%s1 + $0x1e0] sm:$0xff]
    %v149 = vld [vmem:[%s1 + $0x1e8] sm:$0xff]
    %v150 = vld [vmem:[%s1 + $0x1f0] sm:$0xff]
    %v151 = vld [vmem:[%s1 + $0x1f8] sm:$0xff]
    %v152 = vld [vmem:[%s1 + $0x200] sm:$0xff]
    %v153 = vld [vmem:[%s1 + $0x208] sm:$0xff]
    %v154 = vld [vmem:[%s1 + $0x210] sm:$0xff]
    %v155 = vld [vmem:[%s1 + $0x218] sm:$0xff]
    %v156 = vld [vmem:[%s1 + $0x220] sm:$0xff]
    %v157 = vld [vmem:[%s1 + $0x228] sm:$0xff]
    %v158 = vld [vmem:[%s1 + $0x230] sm:$0xff]
    %v159 = vld [vmem:[%s1 + $0x238] sm:$0xff]
    %v160 = vld [vmem:[%s1 + $0x240] sm:$0xff]
    %v161 = vld [vmem:[%s1 + $0x248] sm:$0xff]
    %v162 = vld [vmem:[%s1 + $0x250] sm:$0xff]
    %v163 = vld [vmem:[%s1 + $0x258] sm:$0xff]
    %v164 = vld [vmem:[%s1 + $0x260] sm:$0xff]
    %v165 = vld [vmem:[%s1 + $0x268] sm:$0xff]
    %v166 = vld [vmem:[%s1 + $0x270] sm:$0xff]
    %v167 = vld [vmem:[%s1 + $0x278] sm:$0xff]
    %v168 = vld [vmem:[%s1 + $0x280] sm:$0xff]
    %v169 = vld [vmem:[%s1 + $0x288] sm:$0xff]
    %v170 = vld [vmem:[%s1 + $0x290] sm:$0xff]
    %v171 = vld [vmem:[%s1 + $0x298] sm:$0xff]
    %v172 = vld [vmem:[%s1 + $0x2a0] sm:$0xff]
    %v173 = vld [vmem:[%s1 + $0x2a8] sm:$0xff]
    %v174 = vld [vmem:[%s1 + $0x2b0] sm:$0xff]
    %v175 = vld [vmem:[%s1 + $0x2b8] sm:$0xff]
    %v176 = vld [vmem:[%s1 + $0x2c0] sm:$0xff]
    %v177 = vld [vmem:[%s1 + $0x2c8] sm:$0xff]
    %v178 = vld [vmem:[%s1 + $0x2d0] sm:$0xff]
    %v179 = vld [vmem:[%s1 + $0x2d8] sm:$0xff]
    %v180 = vld [vmem:[%s1 + $0x2e0] sm:$0xff]
    %v181 = vld [vmem:[%s1 + $0x2e8] sm:$0xff]
    %v182 = vld [vmem:[%s1 + $0x2f0] sm:$0xff]
    %v183 = vld [vmem:[%s1 + $0x2f8] sm:$0xff]
    %v184 = vld [vmem:[%s1 + $0x300] sm:$0xff]
    %v185 = vld [vmem:[%s1 + $0x308] sm:$0xff]
    %v186 = vld [vmem:[%s1 + $0x310] sm:$0xff]
    %v187 = vld [vmem:[%s1 + $0x318] sm:$0xff]
    %v188 = vld [vmem:[%s1 + $0x320] sm:$0xff]
    %v189 = vld [vmem:[%s1 + $0x328] sm:$0xff]
    %v190 = vld [vmem:[%s1 + $0x330] sm:$0xff]
    %v191 = vld [vmem:[%s1 + $0x338] sm:$0xff]
    %v192 = vld [vmem:[%s1 + $0x340] sm:$0xff]
    %v193 = vld [vmem:[%s1 + $0x348] sm:$0xff]
    %v194 = vld [vmem:[%s1 + $0x350] sm:$0xff]
    %v195 = vld [vmem:[%s1 + $0x358] sm:$0xff]
    %v196 = vld [vmem:[%s1 + $0x360] sm:$0xff]
    %v197 = vld [vmem:[%s1 + $0x368] sm:$0xff]
    %v198 = vld [vmem:[%s1 + $0x370] sm:$0xff]
    %v199 = vld [vmem:[%s1 + $0x378] sm:$0xff]
    %v200 = vld [vmem:[%s1 + $0x380] sm:$0xff]
    %v201 = vld [vmem:[%s1 + $0x388] sm:$0xff]
    %v202 = vld [vmem:[%s1 + $0x390] sm:$0xff]
    %v203 = vld [vmem:[%s1 + $0x398] sm:$0xff]
    %v204 = vld [vmem:[%s1 + $0x3a0] sm:$0xff]
    %v205 = vld [vmem:[%s1 + $0x3a8] sm:$0xff]
    %v206 = vld [vmem:[%s1 + $0x3b0] sm:$0xff]
    %v207 = vld [vmem:[%s1 + $0x3b8] sm:$0xff]
    %v208 = vld [vmem:[%s1 + $0x3c0] sm:$0xff]
    %v209 = vld [vmem:[%s1 + $0x3c8] sm:$0xff]
    %v210 = vld [vmem:[%s1 + $0x3d0] sm:$0xff]
    %v211 = vld [vmem:[%s1 + $0x3d8] sm:$0xff]
    %v212 = vld [vmem:[%s1 + $0x3e0] sm:$0xff]
    %v213 = vld [vmem:[%s1 + $0x3e8] sm:$0xff]
    %v214 = vld [vmem:[%s1 + $0x3f0] sm:$0xff]
    %v215 = vld [vmem:[%s1 + $0x3f8] sm:$0xff]
    %v216 = vld [vmem:[%s2] sm:$0xff]
    %v217 = vld [vmem:[%s2 + $0x8] sm:$0xff]
    %v218 = vld [vmem:[%s2 + $0x10] sm:$0xff]
    %v219 = vld [vmem:[%s2 + $0x18] sm:$0xff]
    %v220 = vld [vmem:[%s2 + $0x20] sm:$0xff]
    %v221 = vld [vmem:[%s2 + $0x28] sm:$0xff]
    %v222 = vld [vmem:[%s2 + $0x30] sm:$0xff]
    %v223 = vld [vmem:[%s2 + $0x38] sm:$0xff]
    %v224 = vld [vmem:[%s2 + $0x40] sm:$0xff]
    %v225 = vld [vmem:[%s2 + $0x48] sm:$0xff]
    %v226 = vld [vmem:[%s2 + $0x50] sm:$0xff]
    %v227 = vld [vmem:[%s2 + $0x58] sm:$0xff]
    %v228 = vld [vmem:[%s2 + $0x60] sm:$0xff]
    %v229 = vld [vmem:[%s2 + $0x68] sm:$0xff]
    %v230 = vld [vmem:[%s2 + $0x70] sm:$0xff]
    %v231 = vld [vmem:[%s2 + $0x78] sm:$0xff]
    %v232 = vld [vmem:[%s2 + $0x80] sm:$0xff]
    %v233 = vld [vmem:[%s2 + $0x88] sm:$0xff]
    %v234 = vld [vmem:[%s2 + $0x90] sm:$0xff]
    %v235 = vld [vmem:[%s2 + $0x98] sm:$0xff]
    %v236 = vld [vmem:[%s2 + $0xa0] sm:$0xff]
    %v237 = vld [vmem:[%s2 + $0xa8] sm:$0xff]
    %v238 = vld [vmem:[%s2 + $0xb0] sm:$0xff]
    %v239 = vld [vmem:[%s2 + $0xb8] sm:$0xff]
    %v240 = vld [vmem:[%s2 + $0xc0] sm:$0xff]
    %v241 = vld [vmem:[%s2 + $0xc8] sm:$0xff]
    %v242 = vld [vmem:[%s2 + $0xd0] sm:$0xff]
    %v243 = vld [vmem:[%s2 + $0xd8] sm:$0xff]
    %v244 = vld [vmem:[%s2 + $0xe0] sm:$0xff]
    %v245 = vld [vmem:[%s2 + $0xe8] sm:$0xff]
    %v246 = vld [vmem:[%s2 + $0xf0] sm:$0xff]
    %v247 = vld [vmem:[%s2 + $0xf8] sm:$0xff]
    %v248 = vld [vmem:[%s2 + $0x100] sm:$0xff]
    %v249 = vld [vmem:[%s2 + $0x108] sm:$0xff]
    %v250 = vld [vmem:[%s2 + $0x110] sm:$0xff]
    %v251 = vld [vmem:[%s2 + $0x118] sm:$0xff]
    %v252 = vld [vmem:[%s2 + $0x120] sm:$0xff]
    %v253 = vld [vmem:[%s2 + $0x128] sm:$0xff]
    %v254 = vld [vmem:[%s2 + $0x130] sm:$0xff]
    %v255 = vld [vmem:[%s2 + $0x138] sm:$0xff]
    %v256 = vld [vmem:[%s2 + $0x140] sm:$0xff]
    %v257 = vld [vmem:[%s2 + $0x148] sm:$0xff]
    %v258 = vld [vmem:[%s2 + $0x150] sm:$0xff]
    %v259 = vld [vmem:[%s2 + $0x158] sm:$0xff]
    %v260 = vld [vmem:[%s2 + $0x160] sm:$0xff]
    %v261 = vld [vmem:[%s2 + $0x168] sm:$0xff]
    %v262 = vld [vmem:[%s2 + $0x170] sm:$0xff]
    %v263 = vld [vmem:[%s2 + $0x178] sm:$0xff]
    %v264 = vld [vmem:[%s2 + $0x180] sm:$0xff]
    %v265 = vld [vmem:[%s2 + $0x188] sm:$0xff]
    %v266 = vld [vmem:[%s2 + $0x190] sm:$0xff]
    %v267 = vld [vmem:[%s2 + $0x198] sm:$0xff]
    %v268 = vld [vmem:[%s2 + $0x1a0] sm:$0xff]
    %v269 = vld [vmem:[%s2 + $0x1a8] sm:$0xff]
    %v270 = vld [vmem:[%s2 + $0x1b0] sm:$0xff]
    %v271 = vld [vmem:[%s2 + $0x1b8] sm:$0xff]
    %v272 = vld [vmem:[%s2 + $0x1c0] sm:$0xff]
    %v273 = vld [vmem:[%s2 + $0x1c8] sm:$0xff]
    %v274 = vld [vmem:[%s2 + $0x1d0] sm:$0xff]
    %v275 = vld [vmem:[%s2 + $0x1d8] sm:$0xff]
    %v276 = vld [vmem:[%s2 + $0x1e0] sm:$0xff]
    %v277 = vld [vmem:[%s2 + $0x1e8] sm:$0xff]
    %v278 = vld [vmem:[%s2 + $0x1f0] sm:$0xff]
    %v279 = vld [vmem:[%s2 + $0x1f8] sm:$0xff]
    %v280 = vld [vmem:[%s2 + $0x200] sm:$0xff]
    %v281 = vld [vmem:[%s2 + $0x208] sm:$0xff]
    %v282 = vld [vmem:[%s2 + $0x210] sm:$0xff]
    %v283 = vld [vmem:[%s2 + $0x218] sm:$0xff]
    %v284 = vld [vmem:[%s2 + $0x220] sm:$0xff]
    %v285 = vld [vmem:[%s2 + $0x228] sm:$0xff]
    %v286 = vld [vmem:[%s2 + $0x230] sm:$0xff]
    %v287 = vld [vmem:[%s2 + $0x238] sm:$0xff]
    %v288 = vld [vmem:[%s2 + $0x240] sm:$0xff]
    %v289 = vld [vmem:[%s2 + $0x248] sm:$0xff]
    %v290 = vld [vmem:[%s2 + $0x250] sm:$0xff]
    %v291 = vld [vmem:[%s2 + $0x258] sm:$0xff]
    %v292 = vld [vmem:[%s2 + $0x260] sm:$0xff]
    %v293 = vld [vmem:[%s2 + $0x268] sm:$0xff]
    %v294 = vld [vmem:[%s2 + $0x270] sm:$0xff]
    %v295 = vld [vmem:[%s2 + $0x278] sm:$0xff]
    %v296 = vld [vmem:[%s2 + $0x280] sm:$0xff]
    %v297 = vld [vmem:[%s2 + $0x288] sm:$0xff]
    %v298 = vld [vmem:[%s2 + $0x290] sm:$0xff]
    %v299 = vld [vmem:[%s2 + $0x298] sm:$0xff]
    %v300 = vld [vmem:[%s2 + $0x2a0] sm:$0xff]
    %v301 = vld [vmem:[%s2 + $0x2a8] sm:$0xff]
    %v302 = vld [vmem:[%s2 + $0x2b0] sm:$0xff]
    %v303 = vld [vmem:[%s2 + $0x2b8] sm:$0xff]
    %v304 = vld [vmem:[%s2 + $0x2c0] sm:$0xff]
    %v305 = vld [vmem:[%s2 + $0x2c8] sm:$0xff]
    %v306 = vld [vmem:[%s2 + $0x2d0] sm:$0xff]
    %v307 = vld [vmem:[%s2 + $0x2d8] sm:$0xff]
    %v308 = vld [vmem:[%s2 + $0x2e0] sm:$0xff]
    %v309 = vld [vmem:[%s2 + $0x2e8] sm:$0xff]
    %v310 = vld [vmem:[%s2 + $0x2f0] sm:$0xff]
    %v311 = vld [vmem:[%s2 + $0x2f8] sm:$0xff]
    %v312 = vld [vmem:[%s2 + $0x300] sm:$0xff]
    %v313 = vld [vmem:[%s2 + $0x308] sm:$0xff]
    %v314 = vld [vmem:[%s2 + $0x310] sm:$0xff]
    %v315 = vld [vmem:[%s2 + $0x318] sm:$0xff]
    %v316 = vld [vmem:[%s2 + $0x320] sm:$0xff]
    %v317 = vld [vmem:[%s2 + $0x328] sm:$0xff]
    %v318 = vld [vmem:[%s2 + $0x330] sm:$0xff]
    %v319 = vld [vmem:[%s2 + $0x338] sm:$0xff]
    %v320 = vld [vmem:[%s2 + $0x340] sm:$0xff]
    %v321 = vld [vmem:[%s2 + $0x348] sm:$0xff]
    %v322 = vld [vmem:[%s2 + $0x350] sm:$0xff]
    %v323 = vld [vmem:[%s2 + $0x358] sm:$0xff]
    %v324 = vld [vmem:[%s2 + $0x360] sm:$0xff]
    %v325 = vld [vmem:[%s2 + $0x368] sm:$0xff]
    %v326 = vld [vmem:[%s2 + $0x370] sm:$0xff]
    %v327 = vld [vmem:[%s2 + $0x378] sm:$0xff]
    %v328 = vld [vmem:[%s2 + $0x380] sm:$0xff]
    %v329 = vld [vmem:[%s2 + $0x388] sm:$0xff]
    %v330 = vld [vmem:[%s2 + $0x390] sm:$0xff]
    %v331 = vld [vmem:[%s2 + $0x398] sm:$0xff]
    %v332 = vld [vmem:[%s2 + $0x3a0] sm:$0xff]
    %v333 = vld [vmem:[%s2 + $0x3a8] sm:$0xff]
    %v334 = vld [vmem:[%s2 + $0x3b0] sm:$0xff]
    %v335 = vld [vmem:[%s2 + $0x3b8] sm:$0xff]
    %v336 = vld [vmem:[%s2 + $0x3c0] sm:$0xff]
    %v337 = vld [vmem:[%s2 + $0x3c8] sm:$0xff]
    %v338 = vld [vmem:[%s2 + $0x3d0] sm:$0xff]
    %v339 = vld [vmem:[%s2 + $0x3d8] sm:$0xff]
    %v340 = vld [vmem:[%s2 + $0x3e0] sm:$0xff]
    %v341 = vld [vmem:[%s2 + $0x3e8] sm:$0xff]
    %v342 = vld [vmem:[%s2 + $0x3f0] sm:$0xff]
    %v343 = vld [vmem:[%s2 + $0x3f8] sm:$0xff]
    %v344 = vmul.f32 %v216, 0.5
    %v345 = vmul.f32 %v217, 0.5
    %v346 = vmul.f32 %v218, 0.5
    %v347 = vmul.f32 %v219, 0.5
    %v348 = vmul.f32 %v220, 0.5
    %v349 = vmul.f32 %v221, 0.5
    %v350 = vmul.f32 %v222, 0.5
    %v351 = vmul.f32 %v223, 0.5
    %v352 = vmul.f32 %v224, 0.5
    %v353 = vmul.f32 %v225, 0.5
    %v354 = vmul.f32 %v226, 0.5
    %v355 = vmul.f32 %v227, 0.5
    %v356 = vmul.f32 %v228, 0.5
    %v357 = vmul.f32 %v229, 0.5
    %v358 = vmul.f32 %v230, 0.5
    %v359 = vmul.f32 %v231, 0.5
    %v360 = vmul.f32 %v232, 0.5
    %v361 = vmul.f32 %v233, 0.5
    %v362 = vmul.f32 %v234, 0.5
    %v363 = vmul.f32 %v235, 0.5
    %v364 = vmul.f32 %v236, 0.5
    %v365 = vmul.f32 %v237, 0.5
    %v366 = vmul.f32 %v238, 0.5
    %v367 = vmul.f32 %v239, 0.5
    %v368 = vmul.f32 %v240, 0.5
    %v369 = vmul.f32 %v241, 0.5
    %v370 = vmul.f32 %v242, 0.5
    %v371 = vmul.f32 %v243, 0.5
    %v372 = vmul.f32 %v244, 0.5
    %v373 = vmul.f32 %v245, 0.5
    %v374 = vmul.f32 %v246, 0.5
    %v375 = vmul.f32 %v247, 0.5
    %v376 = vmul.f32 %v248, 0.5
    %v377 = vmul.f32 %v249, 0.5
    %v378 = vmul.f32 %v250, 0.5
    %v379 = vmul.f32 %v251, 0.5
    %v380 = vmul.f32 %v252, 0.5
    %v381 = vmul.f32 %v253, 0.5
    %v382 = vmul.f32 %v254, 0.5
    %v383 = vmul.f32 %v255, 0.5
    %v384 = vmul.f32 %v256, 0.5
    %v385 = vmul.f32 %v257, 0.5
    %v386 = vmul.f32 %v258, 0.5
    %v387 = vmul.f32 %v259, 0.5
    %v388 = vmul.f32 %v260, 0.5
    %v389 = vmul.f32 %v261, 0.5
    %v390 = vmul.f32 %v262, 0.5
    %v391 = vmul.f32 %v263, 0.5
    %v392 = vmul.f32 %v264, 0.5
    %v393 = vmul.f32 %v265, 0.5
    %v394 = vmul.f32 %v266, 0.5
    %v395 = vmul.f32 %v267, 0.5
    %v396 = vmul.f32 %v268, 0.5
    %v397 = vmul.f32 %v269, 0.5
    %v398 = vmul.f32 %v270, 0.5
    %v399 = vmul.f32 %v271, 0.5
    %v400 = vmul.f32 %v272, 0.5
    %v401 = vmul.f32 %v273, 0.5
    %v402 = vmul.f32 %v274, 0.5
    %v403 = vmul.f32 %v275, 0.5
    %v404 = vmul.f32 %v276, 0.5
    %v405 = vmul.f32 %v277, 0.5
    %v406 = vmul.f32 %v278, 0.5
    %v407 = vmul.f32 %v279, 0.5
    %v408 = vmul.f32 %v280, 0.5
    %v409 = vmul.f32 %v281, 0.5
    %v410 = vmul.f32 %v282, 0.5
    %v411 = vmul.f32 %v283, 0.5
    %v412 = vmul.f32 %v284, 0.5
    %v413 = vmul.f32 %v285, 0.5
    %v414 = vmul.f32 %v286, 0.5
    %v415 = vmul.f32 %v287, 0.5
    %v416 = vmul.f32 %v288, 0.5
    %v417 = vmul.f32 %v289, 0.5
    %v418 = vmul.f32 %v290, 0.5
    %v419 = vmul.f32 %v291, 0.5
    %v420 = vmul.f32 %v292, 0.5
    %v421 = vmul.f32 %v293, 0.5
    %v422 = vmul.f32 %v294, 0.5
    %v423 = vmul.f32 %v295, 0.5
    %v424 = vmul.f32 %v296, 0.5
    %v425 = vmul.f32 %v297, 0.5
    %v426 = vmul.f32 %v298, 0.5
    %v427 = vmul.f32 %v299, 0.5
    %v428 = vmul.f32 %v300, 0.5
    %v429 = vmul.f32 %v301, 0.5
    %v430 = vmul.f32 %v302, 0.5
    %v431 = vmul.f32 %v303, 0.5
    %v432 = vmul.f32 %v304, 0.5
    %v433 = vmul.f32 %v305, 0.5
    %v434 = vmul.f32 %v306, 0.5
    %v435 = vmul.f32 %v307, 0.5
    %v436 = vmul.f32 %v308, 0.5
    %v437 = vmul.f32 %v309, 0.5
    %v438 = vmul.f32 %v310, 0.5
    %v439 = vmul.f32 %v311, 0.5
    %v440 = vmul.f32 %v312, 0.5
    %v441 = vmul.f32 %v313, 0.5
    %v442 = vmul.f32 %v314, 0.5
    %v443 = vmul.f32 %v315, 0.5
    %v444 = vmul.f32 %v316, 0.5
    %v445 = vmul.f32 %v317, 0.5
    %v446 = vmul.f32 %v318, 0.5
    %v447 = vmul.f32 %v319, 0.5
    %v448 = vmul.f32 %v320, 0.5
    %v449 = vmul.f32 %v321, 0.5
    %v450 = vmul.f32 %v322, 0.5
    %v451 = vmul.f32 %v323, 0.5
    %v452 = vmul.f32 %v324, 0.5
    %v453 = vmul.f32 %v325, 0.5
    %v454 = vmul.f32 %v326, 0.5
    %v455 = vmul.f32 %v327, 0.5
    %v456 = vmul.f32 %v328, 0.5
    %v457 = vmul.f32 %v329, 0.5
    %v458 = vmul.f32 %v330, 0.5
    %v459 = vmul.f32 %v331, 0.5
    %v460 = vmul.f32 %v332, 0.5
    %v461 = vmul.f32 %v333, 0.5
    %v462 = vmul.f32 %v334, 0.5
    %v463 = vmul.f32 %v335, 0.5
    %v464 = vmul.f32 %v336, 0.5
    %v465 = vmul.f32 %v337, 0.5
    %v466 = vmul.f32 %v338, 0.5
    %v467 = vmul.f32 %v339, 0.5
    %v468 = vmul.f32 %v340, 0.5
    %v469 = vmul.f32 %v341, 0.5
    %v470 = vmul.f32 %v342, 0.5
    %v471 = vmul.f32 %v343, 0.5
    %v472 = vmul.f32 %v344, 1.442695
    %v473 = vpow.pop %v472
    %v474 = vmul.f32 %v345, 1.442695
    %v475 = vpow.pop %v474
    %v476 = vmul.f32 %v346, 1.442695
    %v477 = vpow.pop %v476
    %v478 = vmul.f32 %v347, 1.442695
    %v479 = vpow.pop %v478
    %v480 = vmul.f32 %v348, 1.442695
    %v481 = vpow.pop %v480
    %v482 = vmul.f32 %v349, 1.442695
    %v483 = vpow.pop %v482
    %v484 = vmul.f32 %v350, 1.442695
    %v485 = vpow.pop %v484
    %v486 = vmul.f32 %v351, 1.442695
    %v487 = vpow.pop %v486
    %v488 = vmul.f32 %v352, 1.442695
    %v489 = vpow.pop %v488
    %v490 = vmul.f32 %v353, 1.442695
    %v491 = vpow.pop %v490
    %v492 = vmul.f32 %v354, 1.442695
    %v493 = vpow.pop %v492
    %v494 = vmul.f32 %v355, 1.442695
    %v495 = vpow.pop %v494
    %v496 = vmul.f32 %v356, 1.442695
    %v497 = vpow.pop %v496
    %v498 = vmul.f32 %v357, 1.442695
    %v499 = vpow.pop %v498
    %v500 = vmul.f32 %v358, 1.442695
    %v501 = vpow.pop %v500
    %v502 = vmul.f32 %v359, 1.442695
    %v503 = vpow.pop %v502
    %v504 = vmul.f32 %v360, 1.442695
    %v505 = vpow.pop %v504
    %v506 = vmul.f32 %v361, 1.442695
    %v507 = vpow.pop %v506
    %v508 = vmul.f32 %v362, 1.442695
    %v509 = vpow.pop %v508
    %v510 = vmul.f32 %v363, 1.442695
    %v511 = vpow.pop %v510
    %v512 = vmul.f32 %v364, 1.442695
    %v513 = vpow.pop %v512
    %v514 = vmul.f32 %v365, 1.442695
    %v515 = vpow.pop %v514
    %v516 = vmul.f32 %v366, 1.442695
    %v517 = vpow.pop %v516
    %v518 = vmul.f32 %v367, 1.442695
    %v519 = vpow.pop %v518
    %v520 = vmul.f32 %v368, 1.442695
    %v521 = vpow.pop %v520
    %v522 = vmul.f32 %v369, 1.442695
    %v523 = vpow.pop %v522
    %v524 = vmul.f32 %v370, 1.442695
    %v525 = vpow.pop %v524
    %v526 = vmul.f32 %v371, 1.442695
    %v527 = vpow.pop %v526
    %v528 = vmul.f32 %v372, 1.442695
    %v529 = vpow.pop %v528
    %v530 = vmul.f32 %v373, 1.442695
    %v531 = vpow.pop %v530
    %v532 = vmul.f32 %v374, 1.442695
    %v533 = vpow.pop %v532
    %v534 = vmul.f32 %v375, 1.442695
    %v535 = vpow.pop %v534
    %v536 = vmul.f32 %v376, 1.442695
    %v537 = vpow.pop %v536
    %v538 = vmul.f32 %v377, 1.442695
    %v539 = vpow.pop %v538
    %v540 = vmul.f32 %v378, 1.442695
    %v541 = vpow.pop %v540
    %v542 = vmul.f32 %v379, 1.442695
    %v543 = vpow.pop %v542
    %v544 = vmul.f32 %v380, 1.442695
    %v545 = vpow.pop %v544
    %v546 = vmul.f32 %v381, 1.442695
    %v547 = vpow.pop %v546
    %v548 = vmul.f32 %v382, 1.442695
    %v549 = vpow.pop %v548
    %v550 = vmul.f32 %v383, 1.442695
    %v551 = vpow.pop %v550
    %v552 = vmul.f32 %v384, 1.442695
    %v553 = vpow.pop %v552
    %v554 = vmul.f32 %v385, 1.442695
    %v555 = vpow.pop %v554
    %v556 = vmul.f32 %v386, 1.442695
    %v557 = vpow.pop %v556
    %v558 = vmul.f32 %v387, 1.442695
    %v559 = vpow.pop %v558
    %v560 = vmul.f32 %v388, 1.442695
    %v561 = vpow.pop %v560
    %v562 = vmul.f32 %v389, 1.442695
    %v563 = vpow.pop %v562
    %v564 = vmul.f32 %v390, 1.442695
    %v565 = vpow.pop %v564
    %v566 = vmul.f32 %v391, 1.442695
    %v567 = vpow.pop %v566
    %v568 = vmul.f32 %v392, 1.442695
    %v569 = vpow.pop %v568
    %v570 = vmul.f32 %v393, 1.442695
    %v571 = vpow.pop %v570
    %v572 = vmul.f32 %v394, 1.442695
    %v573 = vpow.pop %v572
    %v574 = vmul.f32 %v395, 1.442695
    %v575 = vpow.pop %v574
    %v576 = vmul.f32 %v396, 1.442695
    %v577 = vpow.pop %v576
    %v578 = vmul.f32 %v397, 1.442695
    %v579 = vpow.pop %v578
    %v580 = vmul.f32 %v398, 1.442695
    %v581 = vpow.pop %v580
    %v582 = vmul.f32 %v399, 1.442695
    %v583 = vpow.pop %v582
    %v584 = vmul.f32 %v400, 1.442695
    %v585 = vpow.pop %v584
    %v586 = vmul.f32 %v401, 1.442695
    %v587 = vpow.pop %v586
    %v588 = vmul.f32 %v402, 1.442695
    %v589 = vpow.pop %v588
    %v590 = vmul.f32 %v403, 1.442695
    %v591 = vpow.pop %v590
    %v592 = vmul.f32 %v404, 1.442695
    %v593 = vpow.pop %v592
    %v594 = vmul.f32 %v405, 1.442695
    %v595 = vpow.pop %v594
    %v596 = vmul.f32 %v406, 1.442695
    %v597 = vpow.pop %v596
    %v598 = vmul.f32 %v407, 1.442695
    %v599 = vpow.pop %v598
    %v600 = vmul.f32 %v408, 1.442695
    %v601 = vpow.pop %v600
    %v602 = vmul.f32 %v409, 1.442695
    %v603 = vpow.pop %v602
    %v604 = vmul.f32 %v410, 1.442695
    %v605 = vpow.pop %v604
    %v606 = vmul.f32 %v411, 1.442695
    %v607 = vpow.pop %v606
    %v608 = vmul.f32 %v412, 1.442695
    %v609 = vpow.pop %v608
    %v610 = vmul.f32 %v413, 1.442695
    %v611 = vpow.pop %v610
    %v612 = vmul.f32 %v414, 1.442695
    %v613 = vpow.pop %v612
    %v614 = vmul.f32 %v415, 1.442695
    %v615 = vpow.pop %v614
    %v616 = vmul.f32 %v416, 1.442695
    %v617 = vpow.pop %v616
    %v618 = vmul.f32 %v417, 1.442695
    %v619 = vpow.pop %v618
    %v620 = vmul.f32 %v418, 1.442695
    %v621 = vpow.pop %v620
    %v622 = vmul.f32 %v419, 1.442695
    %v623 = vpow.pop %v622
    %v624 = vmul.f32 %v420, 1.442695
    %v625 = vpow.pop %v624
    %v626 = vmul.f32 %v421, 1.442695
    %v627 = vpow.pop %v626
    %v628 = vmul.f32 %v422, 1.442695
    %v629 = vpow.pop %v628
    %v630 = vmul.f32 %v423, 1.442695
    %v631 = vpow.pop %v630
    %v632 = vmul.f32 %v424, 1.442695
    %v633 = vpow.pop %v632
    %v634 = vmul.f32 %v425, 1.442695
    %v635 = vpow.pop %v634
    %v636 = vmul.f32 %v426, 1.442695
    %v637 = vpow.pop %v636
    %v638 = vmul.f32 %v427, 1.442695
    %v639 = vpow.pop %v638
    %v640 = vmul.f32 %v428, 1.442695
    %v641 = vpow.pop %v640
    %v642 = vmul.f32 %v429, 1.442695
    %v643 = vpow.pop %v642
    %v644 = vmul.f32 %v430, 1.442695
    %v645 = vpow.pop %v644
    %v646 = vmul.f32 %v431, 1.442695
    %v647 = vpow.pop %v646
    %v648 = vmul.f32 %v432, 1.442695
    %v649 = vpow.pop %v648
    %v650 = vmul.f32 %v433, 1.442695
    %v651 = vpow.pop %v650
    %v652 = vmul.f32 %v434, 1.442695
    %v653 = vpow.pop %v652
    %v654 = vmul.f32 %v435, 1.442695
    %v655 = vpow.pop %v654
    %v656 = vmul.f32 %v436, 1.442695
    %v657 = vpow.pop %v656
    %v658 = vmul.f32 %v437, 1.442695
    %v659 = vpow.pop %v658
    %v660 = vmul.f32 %v438, 1.442695
    %v661 = vpow.pop %v660
    %v662 = vmul.f32 %v439, 1.442695
    %v663 = vpow.pop %v662
    %v664 = vmul.f32 %v440, 1.442695
    %v665 = vpow.pop %v664
    %v666 = vmul.f32 %v441, 1.442695
    %v667 = vpow.pop %v666
    %v668 = vmul.f32 %v442, 1.442695
    %v669 = vpow.pop %v668
    %v670 = vmul.f32 %v443, 1.442695
    %v671 = vpow.pop %v670
    %v672 = vmul.f32 %v444, 1.442695
    %v673 = vpow.pop %v672
    %v674 = vmul.f32 %v445, 1.442695
    %v675 = vpow.pop %v674
    %v676 = vmul.f32 %v446, 1.442695
    %v677 = vpow.pop %v676
    %v678 = vmul.f32 %v447, 1.442695
    %v679 = vpow.pop %v678
    %v680 = vmul.f32 %v448, 1.442695
    %v681 = vpow.pop %v680
    %v682 = vmul.f32 %v449, 1.442695
    %v683 = vpow.pop %v682
    %v684 = vmul.f32 %v450, 1.442695
    %v685 = vpow.pop %v684
    %v686 = vmul.f32 %v451, 1.442695
    %v687 = vpow.pop %v686
    %v688 = vmul.f32 %v452, 1.442695
    %v689 = vpow.pop %v688
    %v690 = vmul.f32 %v453, 1.442695
    %v691 = vpow.pop %v690
    %v692 = vmul.f32 %v454, 1.442695
    %v693 = vpow.pop %v692
    %v694 = vmul.f32 %v455, 1.442695
    %v695 = vpow.pop %v694
    %v696 = vmul.f32 %v456, 1.442695
    %v697 = vpow.pop %v696
    %v698 = vmul.f32 %v457, 1.442695
    %v699 = vpow.pop %v698
    %v700 = vmul.f32 %v458, 1.442695
    %v701 = vpow.pop %v700
    %v702 = vmul.f32 %v459, 1.442695
    %v703 = vpow.pop %v702
    %v704 = vmul.f32 %v460, 1.442695
    %v705 = vpow.pop %v704
    %v706 = vmul.f32 %v461, 1.442695
    %v707 = vpow.pop %v706
    %v708 = vmul.f32 %v462, 1.442695
    %v709 = vpow.pop %v708
    %v710 = vmul.f32 %v463, 1.442695
    %v711 = vpow.pop %v710
    %v712 = vmul.f32 %v464, 1.442695
    %v713 = vpow.pop %v712
    %v714 = vmul.f32 %v465, 1.442695
    %v715 = vpow.pop %v714
    %v716 = vmul.f32 %v466, 1.442695
    %v717 = vpow.pop %v716
    %v718 = vmul.f32 %v467, 1.442695
    %v719 = vpow.pop %v718
    %v720 = vmul.f32 %v468, 1.442695
    %v721 = vpow.pop %v720
    %v722 = vmul.f32 %v469, 1.442695
    %v723 = vpow.pop %v722
    %v724 = vmul.f32 %v470, 1.442695
    %v725 = vpow.pop %v724
    %v726 = vmul.f32 %v471, 1.442695
    %v727 = vpow.pop %v726
    %v728 = vld [vmem:[%s3] sm:$0xff]
    %v729 = vld [vmem:[%s3 + $0x8] sm:$0xff]
    %v730 = vld [vmem:[%s3 + $0x10] sm:$0xff]
    %v731 = vld [vmem:[%s3 + $0x18] sm:$0xff]
    %v732 = vld [vmem:[%s3 + $0x20] sm:$0xff]
    %v733 = vld [vmem:[%s3 + $0x28] sm:$0xff]
    %v734 = vld [vmem:[%s3 + $0x30] sm:$0xff]
    %v735 = vld [vmem:[%s3 + $0x38] sm:$0xff]
    %v736 = vld [vmem:[%s3 + $0x40] sm:$0xff]
    %v737 = vld [vmem:[%s3 + $0x48] sm:$0xff]
    %v738 = vld [vmem:[%s3 + $0x50] sm:$0xff]
    %v739 = vld [vmem:[%s3 + $0x58] sm:$0xff]
    %v740 = vld [vmem:[%s3 + $0x60] sm:$0xff]
    %v741 = vld [vmem:[%s3 + $0x68] sm:$0xff]
    %v742 = vld [vmem:[%s3 + $0x70] sm:$0xff]
    %v743 = vld [vmem:[%s3 + $0x78] sm:$0xff]
    %v744 = vld [vmem:[%s3 + $0x80] sm:$0xff]
    %v745 = vld [vmem:[%s3 + $0x88] sm:$0xff]
    %v746 = vld [vmem:[%s3 + $0x90] sm:$0xff]
    %v747 = vld [vmem:[%s3 + $0x98] sm:$0xff]
    %v748 = vld [vmem:[%s3 + $0xa0] sm:$0xff]
    %v749 = vld [vmem:[%s3 + $0xa8] sm:$0xff]
    %v750 = vld [vmem:[%s3 + $0xb0] sm:$0xff]
    %v751 = vld [vmem:[%s3 + $0xb8] sm:$0xff]
    %v752 = vld [vmem:[%s3 + $0xc0] sm:$0xff]
    %v753 = vld [vmem:[%s3 + $0xc8] sm:$0xff]
    %v754 = vld [vmem:[%s3 + $0xd0] sm:$0xff]
    %v755 = vld [vmem:[%s3 + $0xd8] sm:$0xff]
    %v756 = vld [vmem:[%s3 + $0xe0] sm:$0xff]
    %v757 = vld [vmem:[%s3 + $0xe8] sm:$0xff]
    %v758 = vld [vmem:[%s3 + $0xf0] sm:$0xff]
    %v759 = vld [vmem:[%s3 + $0xf8] sm:$0xff]
    %v760 = vld [vmem:[%s3 + $0x100] sm:$0xff]
    %v761 = vld [vmem:[%s3 + $0x108] sm:$0xff]
    %v762 = vld [vmem:[%s3 + $0x110] sm:$0xff]
    %v763 = vld [vmem:[%s3 + $0x118] sm:$0xff]
    %v764 = vld [vmem:[%s3 + $0x120] sm:$0xff]
    %v765 = vld [vmem:[%s3 + $0x128] sm:$0xff]
    %v766 = vld [vmem:[%s3 + $0x130] sm:$0xff]
    %v767 = vld [vmem:[%s3 + $0x138] sm:$0xff]
    %v768 = vld [vmem:[%s3 + $0x140] sm:$0xff]
    %v769 = vld [vmem:[%s3 + $0x148] sm:$0xff]
    %v770 = vld [vmem:[%s3 + $0x150] sm:$0xff]
    %v771 = vld [vmem:[%s3 + $0x158] sm:$0xff]
    %v772 = vld [vmem:[%s3 + $0x160] sm:$0xff]
    %v773 = vld [vmem:[%s3 + $0x168] sm:$0xff]
    %v774 = vld [vmem:[%s3 + $0x170] sm:$0xff]
    %v775 = vld [vmem:[%s3 + $0x178] sm:$0xff]
    %v776 = vld [vmem:[%s3 + $0x180] sm:$0xff]
    %v777 = vld [vmem:[%s3 + $0x188] sm:$0xff]
    %v778 = vld [vmem:[%s3 + $0x190] sm:$0xff]
    %v779 = vld [vmem:[%s3 + $0x198] sm:$0xff]
    %v780 = vld [vmem:[%s3 + $0x1a0] sm:$0xff]
    %v781 = vld [vmem:[%s3 + $0x1a8] sm:$0xff]
    %v782 = vld [vmem:[%s3 + $0x1b0] sm:$0xff]
    %v783 = vld [vmem:[%s3 + $0x1b8] sm:$0xff]
    %v784 = vld [vmem:[%s3 + $0x1c0] sm:$0xff]
    %v785 = vld [vmem:[%s3 + $0x1c8] sm:$0xff]
    %v786 = vld [vmem:[%s3 + $0x1d0] sm:$0xff]
    %v787 = vld [vmem:[%s3 + $0x1d8] sm:$0xff]
    %v788 = vld [vmem:[%s3 + $0x1e0] sm:$0xff]
    %v789 = vld [vmem:[%s3 + $0x1e8] sm:$0xff]
    %v790 = vld [vmem:[%s3 + $0x1f0] sm:$0xff]
    %v791 = vld [vmem:[%s3 + $0x1f8] sm:$0xff]
    %v792 = vld [vmem:[%s3 + $0x200] sm:$0xff]
    %v793 = vld [vmem:[%s3 + $0x208] sm:$0xff]
    %v794 = vld [vmem:[%s3 + $0x210] sm:$0xff]
    %v795 = vld [vmem:[%s3 + $0x218] sm:$0xff]
    %v796 = vld [vmem:[%s3 + $0x220] sm:$0xff]
    %v797 = vld [vmem:[%s3 + $0x228] sm:$0xff]
    %v798 = vld [vmem:[%s3 + $0x230] sm:$0xff]
    %v799 = vld [vmem:[%s3 + $0x238] sm:$0xff]
    %v800 = vld [vmem:[%s3 + $0x240] sm:$0xff]
    %v801 = vld [vmem:[%s3 + $0x248] sm:$0xff]
    %v802 = vld [vmem:[%s3 + $0x250] sm:$0xff]
    %v803 = vld [vmem:[%s3 + $0x258] sm:$0xff]
    %v804 = vld [vmem:[%s3 + $0x260] sm:$0xff]
    %v805 = vld [vmem:[%s3 + $0x268] sm:$0xff]
    %v806 = vld [vmem:[%s3 + $0x270] sm:$0xff]
    %v807 = vld [vmem:[%s3 + $0x278] sm:$0xff]
    %v808 = vld [vmem:[%s3 + $0x280] sm:$0xff]
    %v809 = vld [vmem:[%s3 + $0x288] sm:$0xff]
    %v810 = vld [vmem:[%s3 + $0x290] sm:$0xff]
    %v811 = vld [vmem:[%s3 + $0x298] sm:$0xff]
    %v812 = vld [vmem:[%s3 + $0x2a0] sm:$0xff]
    %v813 = vld [vmem:[%s3 + $0x2a8] sm:$0xff]
    %v814 = vld [vmem:[%s3 + $0x2b0] sm:$0xff]
    %v815 = vld [vmem:[%s3 + $0x2b8] sm:$0xff]
    %v816 = vld [vmem:[%s3 + $0x2c0] sm:$0xff]
    %v817 = vld [vmem:[%s3 + $0x2c8] sm:$0xff]
    %v818 = vld [vmem:[%s3 + $0x2d0] sm:$0xff]
    %v819 = vld [vmem:[%s3 + $0x2d8] sm:$0xff]
    %v820 = vld [vmem:[%s3 + $0x2e0] sm:$0xff]
    %v821 = vld [vmem:[%s3 + $0x2e8] sm:$0xff]
    %v822 = vld [vmem:[%s3 + $0x2f0] sm:$0xff]
    %v823 = vld [vmem:[%s3 + $0x2f8] sm:$0xff]
    %v824 = vld [vmem:[%s3 + $0x300] sm:$0xff]
    %v825 = vld [vmem:[%s3 + $0x308] sm:$0xff]
    %v826 = vld [vmem:[%s3 + $0x310] sm:$0xff]
    %v827 = vld [vmem:[%s3 + $0x318] sm:$0xff]
    %v828 = vld [vmem:[%s3 + $0x320] sm:$0xff]
    %v829 = vld [vmem:[%s3 + $0x328] sm:$0xff]
    %v830 = vld [vmem:[%s3 + $0x330] sm:$0xff]
    %v831 = vld [vmem:[%s3 + $0x338] sm:$0xff]
    %v832 = vld [vmem:[%s3 + $0x340] sm:$0xff]
    %v833 = vld [vmem:[%s3 + $0x348] sm:$0xff]
    %v834 = vld [vmem:[%s3 + $0x350] sm:$0xff]
    %v835 = vld [vmem:[%s3 + $0x358] sm:$0xff]
    %v836 = vld [vmem:[%s3 + $0x360] sm:$0xff]
    %v837 = vld [vmem:[%s3 + $0x368] sm:$0xff]
    %v838 = vld [vmem:[%s3 + $0x370] sm:$0xff]
    %v839 = vld [vmem:[%s3 + $0x378] sm:$0xff]
    %v840 = vld [vmem:[%s3 + $0x380] sm:$0xff]
    %v841 = vld [vmem:[%s3 + $0x388] sm:$0xff]
    %v842 = vld [vmem:[%s3 + $0x390] sm:$0xff]
    %v843 = vld [vmem:[%s3 + $0x398] sm:$0xff]
    %v844 = vld [vmem:[%s3 + $0x3a0] sm:$0xff]
    %v845 = vld [vmem:[%s3 + $0x3a8] sm:$0xff]
    %v846 = vld [vmem:[%s3 + $0x3b0] sm:$0xff]
    %v847 = vld [vmem:[%s3 + $0x3b8] sm:$0xff]
    %v848 = vld [vmem:[%s3 + $0x3c0] sm:$0xff]
    %v849 = vld [vmem:[%s3 + $0x3c8] sm:$0xff]
    %v850 = vld [vmem:[%s3 + $0x3d0] sm:$0xff]
    %v851 = vld [vmem:[%s3 + $0x3d8] sm:$0xff]
    %v852 = vld [vmem:[%s3 + $0x3e0] sm:$0xff]
    %v853 = vld [vmem:[%s3 + $0x3e8] sm:$0xff]
    %v854 = vld [vmem:[%s3 + $0x3f0] sm:$0xff]
    %v855 = vld [vmem:[%s3 + $0x3f8] sm:$0xff]
    %v856 = vmul.f32 %v473, %v728
    %v857 = vmul.f32 %v475, %v729
    %v858 = vmul.f32 %v477, %v730
    %v859 = vmul.f32 %v479, %v731
    %v860 = vmul.f32 %v481, %v732
    %v861 = vmul.f32 %v483, %v733
    %v862 = vmul.f32 %v485, %v734
    %v863 = vmul.f32 %v487, %v735
    %v864 = vmul.f32 %v489, %v736
    %v865 = vmul.f32 %v491, %v737
    %v866 = vmul.f32 %v493, %v738
    %v867 = vmul.f32 %v495, %v739
    %v868 = vmul.f32 %v497, %v740
    %v869 = vmul.f32 %v499, %v741
    %v870 = vmul.f32 %v501, %v742
    %v871 = vmul.f32 %v503, %v743
    %v872 = vmul.f32 %v505, %v744
    %v873 = vmul.f32 %v507, %v745
    %v874 = vmul.f32 %v509, %v746
    %v875 = vmul.f32 %v511, %v747
    %v876 = vmul.f32 %v513, %v748
    %v877 = vmul.f32 %v515, %v749
    %v878 = vmul.f32 %v517, %v750
    %v879 = vmul.f32 %v519, %v751
    %v880 = vmul.f32 %v521, %v752
    %v881 = vmul.f32 %v523, %v753
    %v882 = vmul.f32 %v525, %v754
    %v883 = vmul.f32 %v527, %v755
    %v884 = vmul.f32 %v529, %v756
    %v885 = vmul.f32 %v531, %v757
    %v886 = vmul.f32 %v533, %v758
    %v887 = vmul.f32 %v535, %v759
    %v888 = vmul.f32 %v537, %v760
    %v889 = vmul.f32 %v539, %v761
    %v890 = vmul.f32 %v541, %v762
    %v891 = vmul.f32 %v543, %v763
    %v892 = vmul.f32 %v545, %v764
    %v893 = vmul.f32 %v547, %v765
    %v894 = vmul.f32 %v549, %v766
    %v895 = vmul.f32 %v551, %v767
    %v896 = vmul.f32 %v553, %v768
    %v897 = vmul.f32 %v555, %v769
    %v898 = vmul.f32 %v557, %v770
    %v899 = vmul.f32 %v559, %v771
    %v900 = vmul.f32 %v561, %v772
    %v901 = vmul.f32 %v563, %v773
    %v902 = vmul.f32 %v565, %v774
    %v903 = vmul.f32 %v567, %v775
    %v904 = vmul.f32 %v569, %v776
    %v905 = vmul.f32 %v571, %v777
    %v906 = vmul.f32 %v573, %v778
    %v907 = vmul.f32 %v575, %v779
    %v908 = vmul.f32 %v577, %v780
    %v909 = vmul.f32 %v579, %v781
    %v910 = vmul.f32 %v581, %v782
    %v911 = vmul.f32 %v583, %v783
    %v912 = vmul.f32 %v585, %v784
    %v913 = vmul.f32 %v587, %v785
    %v914 = vmul.f32 %v589, %v786
    %v915 = vmul.f32 %v591, %v787
    %v916 = vmul.f32 %v593, %v788
    %v917 = vmul.f32 %v595, %v789
    %v918 = vmul.f32 %v597, %v790
    %v919 = vmul.f32 %v599, %v791
    %v920 = vmul.f32 %v601, %v792
    %v921 = vmul.f32 %v603, %v793
    %v922 = vmul.f32 %v605, %v794
    %v923 = vmul.f32 %v607, %v795
    %v924 = vmul.f32 %v609, %v796
    %v925 = vmul.f32 %v611, %v797
    %v926 = vmul.f32 %v613, %v798
    %v927 = vmul.f32 %v615, %v799
    %v928 = vmul.f32 %v617, %v800
    %v929 = vmul.f32 %v619, %v801
    %v930 = vmul.f32 %v621, %v802
    %v931 = vmul.f32 %v623, %v803
    %v932 = vmul.f32 %v625, %v804
    %v933 = vmul.f32 %v627, %v805
    %v934 = vmul.f32 %v629, %v806
    %v935 = vmul.f32 %v631, %v807
    %v936 = vmul.f32 %v633, %v808
    %v937 = vmul.f32 %v635, %v809
    %v938 = vmul.f32 %v637, %v810
    %v939 = vmul.f32 %v639, %v811
    %v940 = vmul.f32 %v641, %v812
    %v941 = vmul.f32 %v643, %v813
    %v942 = vmul.f32 %v645, %v814
    %v943 = vmul.f32 %v647, %v815
    %v944 = vmul.f32 %v649, %v816
    %v945 = vmul.f32 %v651, %v817
    %v946 = vmul.f32 %v653, %v818
    %v947 = vmul.f32 %v655, %v819
    %v948 = vmul.f32 %v657, %v820
    %v949 = vmul.f32 %v659, %v821
    %v950 = vmul.f32 %v661, %v822
    %v951 = vmul.f32 %v663, %v823
    %v952 = vmul.f32 %v665, %v824
    %v953 = vmul.f32 %v667, %v825
    %v954 = vmul.f32 %v669, %v826
    %v955 = vmul.f32 %v671, %v827
    %v956 = vmul.f32 %v673, %v828
    %v957 = vmul.f32 %v675, %v829
    %v958 = vmul.f32 %v677, %v830
    %v959 = vmul.f32 %v679, %v831
    %v960 = vmul.f32 %v681, %v832
    %v961 = vmul.f32 %v683, %v833
    %v962 = vmul.f32 %v685, %v834
    %v963 = vmul.f32 %v687, %v835
    %v964 = vmul.f32 %v689, %v836
    %v965 = vmul.f32 %v691, %v837
    %v966 = vmul.f32 %v693, %v838
    %v967 = vmul.f32 %v695, %v839
    %v968 = vmul.f32 %v697, %v840
    %v969 = vmul.f32 %v699, %v841
    %v970 = vmul.f32 %v701, %v842
    %v971 = vmul.f32 %v703, %v843
    %v972 = vmul.f32 %v705, %v844
    %v973 = vmul.f32 %v707, %v845
    %v974 = vmul.f32 %v709, %v846
    %v975 = vmul.f32 %v711, %v847
    %v976 = vmul.f32 %v713, %v848
    %v977 = vmul.f32 %v715, %v849
    %v978 = vmul.f32 %v717, %v850
    %v979 = vmul.f32 %v719, %v851
    %v980 = vmul.f32 %v721, %v852
    %v981 = vmul.f32 %v723, %v853
    %v982 = vmul.f32 %v725, %v854
    %v983 = vmul.f32 %v727, %v855
    %v984 = vadd.f32 %v88, %v856
    %v985 = vadd.f32 %v89, %v857
    %v986 = vadd.f32 %v90, %v858
    %v987 = vadd.f32 %v91, %v859
    %v988 = vadd.f32 %v92, %v860
    %v989 = vadd.f32 %v93, %v861
    %v990 = vadd.f32 %v94, %v862
    %v991 = vadd.f32 %v95, %v863
    %v992 = vadd.f32 %v96, %v864
    %v993 = vadd.f32 %v97, %v865
    %v994 = vadd.f32 %v98, %v866
    %v995 = vadd.f32 %v99, %v867
    %v996 = vadd.f32 %v100, %v868
    %v997 = vadd.f32 %v101, %v869
    %v998 = vadd.f32 %v102, %v870
    %v999 = vadd.f32 %v103, %v871
    %v1000 = vadd.f32 %v104, %v872
    %v1001 = vadd.f32 %v105, %v873
    %v1002 = vadd.f32 %v106, %v874
    %v1003 = vadd.f32 %v107, %v875
    %v1004 = vadd.f32 %v108, %v876
    %v1005 = vadd.f32 %v109, %v877
    %v1006 = vadd.f32 %v110, %v878
    %v1007 = vadd.f32 %v111, %v879
    %v1008 = vadd.f32 %v112, %v880
    %v1009 = vadd.f32 %v113, %v881
    %v1010 = vadd.f32 %v114, %v882
    %v1011 = vadd.f32 %v115, %v883
    %v1012 = vadd.f32 %v116, %v884
    %v1013 = vadd.f32 %v117, %v885
    %v1014 = vadd.f32 %v118, %v886
    %v1015 = vadd.f32 %v119, %v887
    %v1016 = vadd.f32 %v120, %v888
    %v1017 = vadd.f32 %v121, %v889
    %v1018 = vadd.f32 %v122, %v890
    %v1019 = vadd.f32 %v123, %v891
    %v1020 = vadd.f32 %v124, %v892
    %v1021 = vadd.f32 %v125, %v893
    %v1022 = vadd.f32 %v126, %v894
    %v1023 = vadd.f32 %v127, %v895
    %v1024 = vadd.f32 %v128, %v896
    %v1025 = vadd.f32 %v129, %v897
    %v1026 = vadd.f32 %v130, %v898
    %v1027 = vadd.f32 %v131, %v899
    %v1028 = vadd.f32 %v132, %v900
    %v1029 = vadd.f32 %v133, %v901
    %v1030 = vadd.f32 %v134, %v902
    %v1031 = vadd.f32 %v135, %v903
    %v1032 = vadd.f32 %v136, %v904
    %v1033 = vadd.f32 %v137, %v905
    %v1034 = vadd.f32 %v138, %v906
    %v1035 = vadd.f32 %v139, %v907
    %v1036 = vadd.f32 %v140, %v908
    %v1037 = vadd.f32 %v141, %v909
    %v1038 = vadd.f32 %v142, %v910
    %v1039 = vadd.f32 %v143, %v911
    %v1040 = vadd.f32 %v144, %v912
    %v1041 = vadd.f32 %v145, %v913
    %v1042 = vadd.f32 %v146, %v914
    %v1043 = vadd.f32 %v147, %v915
    %v1044 = vadd.f32 %v148, %v916
    %v1045 = vadd.f32 %v149, %v917
    %v1046 = vadd.f32 %v150, %v918
    %v1047 = vadd.f32 %v151, %v919
    %v1048 = vadd.f32 %v152, %v920
    %v1049 = vadd.f32 %v153, %v921
    %v1050 = vadd.f32 %v154, %v922
    %v1051 = vadd.f32 %v155, %v923
    %v1052 = vadd.f32 %v156, %v924
    %v1053 = vadd.f32 %v157, %v925
    %v1054 = vadd.f32 %v158, %v926
    %v1055 = vadd.f32 %v159, %v927
    %v1056 = vadd.f32 %v160, %v928
    %v1057 = vadd.f32 %v161, %v929
    %v1058 = vadd.f32 %v162, %v930
    %v1059 = vadd.f32 %v163, %v931
    %v1060 = vadd.f32 %v164, %v932
    %v1061 = vadd.f32 %v165, %v933
    %v1062 = vadd.f32 %v166, %v934
    %v1063 = vadd.f32 %v167, %v935
    %v1064 = vadd.f32 %v168, %v936
    %v1065 = vadd.f32 %v169, %v937
    %v1066 = vadd.f32 %v170, %v938
    %v1067 = vadd.f32 %v171, %v939
    %v1068 = vadd.f32 %v172, %v940
    %v1069 = vadd.f32 %v173, %v941
    %v1070 = vadd.f32 %v174, %v942
    %v1071 = vadd.f32 %v175, %v943
    %v1072 = vadd.f32 %v176, %v944
    %v1073 = vadd.f32 %v177, %v945
    %v1074 = vadd.f32 %v178, %v946
    %v1075 = vadd.f32 %v179, %v947
    %v1076 = vadd.f32 %v180, %v948
    %v1077 = vadd.f32 %v181, %v949
    %v1078 = vadd.f32 %v182, %v950
    %v1079 = vadd.f32 %v183, %v951
    %v1080 = vadd.f32 %v184, %v952
    %v1081 = vadd.f32 %v185, %v953
    %v1082 = vadd.f32 %v186, %v954
    %v1083 = vadd.f32 %v187, %v955
    %v1084 = vadd.f32 %v188, %v956
    %v1085 = vadd.f32 %v189, %v957
    %v1086 = vadd.f32 %v190, %v958
    %v1087 = vadd.f32 %v191, %v959
    %v1088 = vadd.f32 %v192, %v960
    %v1089 = vadd.f32 %v193, %v961
    %v1090 = vadd.f32 %v194, %v962
    %v1091 = vadd.f32 %v195, %v963
    %v1092 = vadd.f32 %v196, %v964
    %v1093 = vadd.f32 %v197, %v965
    %v1094 = vadd.f32 %v198, %v966
    %v1095 = vadd.f32 %v199, %v967
    %v1096 = vadd.f32 %v200, %v968
    %v1097 = vadd.f32 %v201, %v969
    %v1098 = vadd.f32 %v202, %v970
    %v1099 = vadd.f32 %v203, %v971
    %v1100 = vadd.f32 %v204, %v972
    %v1101 = vadd.f32 %v205, %v973
    %v1102 = vadd.f32 %v206, %v974
    %v1103 = vadd.f32 %v207, %v975
    %v1104 = vadd.f32 %v208, %v976
    %v1105 = vadd.f32 %v209, %v977
    %v1106 = vadd.f32 %v210, %v978
    %v1107 = vadd.f32 %v211, %v979
    %v1108 = vadd.f32 %v212, %v980
    %v1109 = vadd.f32 %v213, %v981
    %v1110 = vadd.f32 %v214, %v982
    %v1111 = vadd.f32 %v215, %v983
    %v1112 = vpack.c.bf16 %v985, %v984
    %v1113 = vpack.c.bf16 %v987, %v986
    %v1114 = vpack.c.bf16 %v989, %v988
    %v1115 = vpack.c.bf16 %v991, %v990
    %v1116 = vpack.c.bf16 %v993, %v992
    %v1117 = vpack.c.bf16 %v995, %v994
    %v1118 = vpack.c.bf16 %v997, %v996
    %v1119 = vpack.c.bf16 %v999, %v998
    %v1120 = vpack.c.bf16 %v1001, %v1000
    %v1121 = vpack.c.bf16 %v1003, %v1002
    %v1122 = vpack.c.bf16 %v1005, %v1004
    %v1123 = vpack.c.bf16 %v1007, %v1006
    %v1124 = vpack.c.bf16 %v1009, %v1008
    %v1125 = vpack.c.bf16 %v1011, %v1010
    %v1126 = vpack.c.bf16 %v1013, %v1012
    %v1127 = vpack.c.bf16 %v1015, %v1014
    %v1128 = vpack.c.bf16 %v1017, %v1016
    %v1129 = vpack.c.bf16 %v1019, %v1018
    %v1130 = vpack.c.bf16 %v1021, %v1020
    %v1131 = vpack.c.bf16 %v1023, %v1022
    %v1132 = vpack.c.bf16 %v1025, %v1024
    %v1133 = vpack.c.bf16 %v1027, %v1026
    %v1134 = vpack.c.bf16 %v1029, %v1028
    %v1135 = vpack.c.bf16 %v1031, %v1030
    %v1136 = vpack.c.bf16 %v1033, %v1032
    %v1137 = vpack.c.bf16 %v1035, %v1034
    %v1138 = vpack.c.bf16 %v1037, %v1036
    %v1139 = vpack.c.bf16 %v1039, %v1038
    %v1140 = vpack.c.bf16 %v1041, %v1040
    %v1141 = vpack.c.bf16 %v1043, %v1042
    %v1142 = vpack.c.bf16 %v1045, %v1044
    %v1143 = vpack.c.bf16 %v1047, %v1046
    %v1144 = vpack.c.bf16 %v1049, %v1048
    %v1145 = vpack.c.bf16 %v1051, %v1050
    %v1146 = vpack.c.bf16 %v1053, %v1052
    %v1147 = vpack.c.bf16 %v1055, %v1054
    %v1148 = vpack.c.bf16 %v1057, %v1056
    %v1149 = vpack.c.bf16 %v1059, %v1058
    %v1150 = vpack.c.bf16 %v1061, %v1060
    %v1151 = vpack.c.bf16 %v1063, %v1062
    %v1152 = vpack.c.bf16 %v1065, %v1064
    %v1153 = vpack.c.bf16 %v1067, %v1066
    %v1154 = vpack.c.bf16 %v1069, %v1068
    %v1155 = vpack.c.bf16 %v1071, %v1070
    %v1156 = vpack.c.bf16 %v1073, %v1072
    %v1157 = vpack.c.bf16 %v1075, %v1074
    %v1158 = vpack.c.bf16 %v1077, %v1076
    %v1159 = vpack.c.bf16 %v1079, %v1078
    %v1160 = vpack.c.bf16 %v1081, %v1080
    %v1161 = vpack.c.bf16 %v1083, %v1082
    %v1162 = vpack.c.bf16 %v1085, %v1084
    %v1163 = vpack.c.bf16 %v1087, %v1086
    %v1164 = vpack.c.bf16 %v1089, %v1088
    %v1165 = vpack.c.bf16 %v1091, %v1090
    %v1166 = vpack.c.bf16 %v1093, %v1092
    %v1167 = vpack.c.bf16 %v1095, %v1094
    %v1168 = vpack.c.bf16 %v1097, %v1096
    %v1169 = vpack.c.bf16 %v1099, %v1098
    %v1170 = vpack.c.bf16 %v1101, %v1100
    %v1171 = vpack.c.bf16 %v1103, %v1102
    %v1172 = vpack.c.bf16 %v1105, %v1104
    %v1173 = vpack.c.bf16 %v1107, %v1106
    %v1174 = vpack.c.bf16 %v1109, %v1108
    %v1175 = vpack.c.bf16 %v1111, %v1110
    %1176 = vst [vmem:[#allocation2] sm:$0xff] %v1112
    %1177 = vst [vmem:[#allocation2 + $0x8] sm:$0xff] %v1113
    %1178 = vst [vmem:[#allocation2 + $0x10] sm:$0xff] %v1114
    %1179 = vst [vmem:[#allocation2 + $0x18] sm:$0xff] %v1115
    %1180 = vst [vmem:[#allocation2 + $0x20] sm:$0xff] %v1116
    %1181 = vst [vmem:[#allocation2 + $0x28] sm:$0xff] %v1117
    %1182 = vst [vmem:[#allocation2 + $0x30] sm:$0xff] %v1118
    %1183 = vst [vmem:[#allocation2 + $0x38] sm:$0xff] %v1119
    %1184 = vst [vmem:[#allocation2 + $0x40] sm:$0xff] %v1120
    %1185 = vst [vmem:[#allocation2 + $0x48] sm:$0xff] %v1121
    %1186 = vst [vmem:[#allocation2 + $0x50] sm:$0xff] %v1122
    %1187 = vst [vmem:[#allocation2 + $0x58] sm:$0xff] %v1123
    %1188 = vst [vmem:[#allocation2 + $0x60] sm:$0xff] %v1124
    %1189 = vst [vmem:[#allocation2 + $0x68] sm:$0xff] %v1125
    %1190 = vst [vmem:[#allocation2 + $0x70] sm:$0xff] %v1126
    %1191 = vst [vmem:[#allocation2 + $0x78] sm:$0xff] %v1127
    %1192 = vst [vmem:[#allocation2 + $0x80] sm:$0xff] %v1128
    %1193 = vst [vmem:[#allocation2 + $0x88] sm:$0xff] %v1129
    %1194 = vst [vmem:[#allocation2 + $0x90] sm:$0xff] %v1130
    %1195 = vst [vmem:[#allocation2 + $0x98] sm:$0xff] %v1131
    %1196 = vst [vmem:[#allocation2 + $0xa0] sm:$0xff] %v1132
    %1197 = vst [vmem:[#allocation2 + $0xa8] sm:$0xff] %v1133
    %1198 = vst [vmem:[#allocation2 + $0xb0] sm:$0xff] %v1134
    %1199 = vst [vmem:[#allocation2 + $0xb8] sm:$0xff] %v1135
    %1200 = vst [vmem:[#allocation2 + $0xc0] sm:$0xff] %v1136
    %1201 = vst [vmem:[#allocation2 + $0xc8] sm:$0xff] %v1137
    %1202 = vst [vmem:[#allocation2 + $0xd0] sm:$0xff] %v1138
    %1203 = vst [vmem:[#allocation2 + $0xd8] sm:$0xff] %v1139
    %1204 = vst [vmem:[#allocation2 + $0xe0] sm:$0xff] %v1140
    %1205 = vst [vmem:[#allocation2 + $0xe8] sm:$0xff] %v1141
    %1206 = vst [vmem:[#allocation2 + $0xf0] sm:$0xff] %v1142
    %1207 = vst [vmem:[#allocation2 + $0xf8] sm:$0xff] %v1143
    %1208 = vst [vmem:[#allocation2 + $0x100] sm:$0xff] %v1144
    %1209 = vst [vmem:[#allocation2 + $0x108] sm:$0xff] %v1145
    %1210 = vst [vmem:[#allocation2 + $0x110] sm:$0xff] %v1146
    %1211 = vst [vmem:[#allocation2 + $0x118] sm:$0xff] %v1147
    %1212 = vst [vmem:[#allocation2 + $0x120] sm:$0xff] %v1148
    %1213 = vst [vmem:[#allocation2 + $0x128] sm:$0xff] %v1149
    %1214 = vst [vmem:[#allocation2 + $0x130] sm:$0xff] %v1150
    %1215 = vst [vmem:[#allocation2 + $0x138] sm:$0xff] %v1151
    %1216 = vst [vmem:[#allocation2 + $0x140] sm:$0xff] %v1152
    %1217 = vst [vmem:[#allocation2 + $0x148] sm:$0xff] %v1153
    %1218 = vst [vmem:[#allocation2 + $0x150] sm:$0xff] %v1154
    %1219 = vst [vmem:[#allocation2 + $0x158] sm:$0xff] %v1155
    %1220 = vst [vmem:[#allocation2 + $0x160] sm:$0xff] %v1156
    %1221 = vst [vmem:[#allocation2 + $0x168] sm:$0xff] %v1157
    %1222 = vst [vmem:[#allocation2 + $0x170] sm:$0xff] %v1158
    %1223 = vst [vmem:[#allocation2 + $0x178] sm:$0xff] %v1159
    %1224 = vst [vmem:[#allocation2 + $0x180] sm:$0xff] %v1160
    %1225 = vst [vmem:[#allocation2 + $0x188] sm:$0xff] %v1161
    %1226 = vst [vmem:[#allocation2 + $0x190] sm:$0xff] %v1162
    %1227 = vst [vmem:[#allocation2 + $0x198] sm:$0xff] %v1163
    %1228 = vst [vmem:[#allocation2 + $0x1a0] sm:$0xff] %v1164
    %1229 = vst [vmem:[#allocation2 + $0x1a8] sm:$0xff] %v1165
    %1230 = vst [vmem:[#allocation2 + $0x1b0] sm:$0xff] %v1166
    %1231 = vst [vmem:[#allocation2 + $0x1b8] sm:$0xff] %v1167
    %1232 = vst [vmem:[#allocation2 + $0x1c0] sm:$0xff] %v1168
    %1233 = vst [vmem:[#allocation2 + $0x1c8] sm:$0xff] %v1169
    %1234 = vst [vmem:[#allocation2 + $0x1d0] sm:$0xff] %v1170
    %1235 = vst [vmem:[#allocation2 + $0x1d8] sm:$0xff] %v1171
    %1236 = vst [vmem:[#allocation2 + $0x1e0] sm:$0xff] %v1172
    %1237 = vst [vmem:[#allocation2 + $0x1e8] sm:$0xff] %v1173
    %1238 = vst [vmem:[#allocation2 + $0x1f0] sm:$0xff] %v1174
    %1239 = vst [vmem:[#allocation2 + $0x1f8] sm:$0xff] %v1175
    %v1240 = vld [vmem:[%s7] sm:$0xff]
    %v1241 = vld [vmem:[%s7 + $0x8] sm:$0xff]
    %v1242 = vld [vmem:[%s7 + $0x10] sm:$0xff]
    %v1243 = vld [vmem:[%s7 + $0x18] sm:$0xff]
    %v1244 = vld [vmem:[%s7 + $0x20] sm:$0xff]
    %v1245 = vld [vmem:[%s7 + $0x28] sm:$0xff]
    %v1246 = vld [vmem:[%s7 + $0x30] sm:$0xff]
    %v1247 = vld [vmem:[%s7 + $0x38] sm:$0xff]
    %v1248 = vld [vmem:[%s7 + $0x40] sm:$0xff]
    %v1249 = vld [vmem:[%s7 + $0x48] sm:$0xff]
    %v1250 = vld [vmem:[%s7 + $0x50] sm:$0xff]
    %v1251 = vld [vmem:[%s7 + $0x58] sm:$0xff]
    %v1252 = vld [vmem:[%s7 + $0x60] sm:$0xff]
    %v1253 = vld [vmem:[%s7 + $0x68] sm:$0xff]
    %v1254 = vld [vmem:[%s7 + $0x70] sm:$0xff]
    %v1255 = vld [vmem:[%s7 + $0x78] sm:$0xff]
    %v1256 = vld [vmem:[%s8] sm:$0xff]
    %v1257 = vld [vmem:[%s8 + $0x8] sm:$0xff]
    %v1258 = vld [vmem:[%s8 + $0x10] sm:$0xff]
    %v1259 = vld [vmem:[%s8 + $0x18] sm:$0xff]
    %v1260 = vld [vmem:[%s8 + $0x20] sm:$0xff]
    %v1261 = vld [vmem:[%s8 + $0x28] sm:$0xff]
    %v1262 = vld [vmem:[%s8 + $0x30] sm:$0xff]
    %v1263 = vld [vmem:[%s8 + $0x38] sm:$0xff]
    %v1264 = vld [vmem:[%s8 + $0x40] sm:$0xff]
    %v1265 = vld [vmem:[%s8 + $0x48] sm:$0xff]
    %v1266 = vld [vmem:[%s8 + $0x50] sm:$0xff]
    %v1267 = vld [vmem:[%s8 + $0x58] sm:$0xff]
    %v1268 = vld [vmem:[%s8 + $0x60] sm:$0xff]
    %v1269 = vld [vmem:[%s8 + $0x68] sm:$0xff]
    %v1270 = vld [vmem:[%s8 + $0x70] sm:$0xff]
    %v1271 = vld [vmem:[%s8 + $0x78] sm:$0xff]
    %v1272 = vmul.f32 %v1256, 0.5
    %v1273 = vmul.f32 %v1257, 0.5
    %v1274 = vmul.f32 %v1258, 0.5
    %v1275 = vmul.f32 %v1259, 0.5
    %v1276 = vmul.f32 %v1260, 0.5
    %v1277 = vmul.f32 %v1261, 0.5
    %v1278 = vmul.f32 %v1262, 0.5
    %v1279 = vmul.f32 %v1263, 0.5
    %v1280 = vmul.f32 %v1264, 0.5
    %v1281 = vmul.f32 %v1265, 0.5
    %v1282 = vmul.f32 %v1266, 0.5
    %v1283 = vmul.f32 %v1267, 0.5
    %v1284 = vmul.f32 %v1268, 0.5
    %v1285 = vmul.f32 %v1269, 0.5
    %v1286 = vmul.f32 %v1270, 0.5
    %v1287 = vmul.f32 %v1271, 0.5
    %v1288 = vmul.f32 %v1272, 1.442695
    %v1289 = vpow.pop %v1288
    %v1290 = vmul.f32 %v1273, 1.442695
    %v1291 = vpow.pop %v1290
    %v1292 = vmul.f32 %v1274, 1.442695
    %v1293 = vpow.pop %v1292
    %v1294 = vmul.f32 %v1275, 1.442695
    %v1295 = vpow.pop %v1294
    %v1296 = vmul.f32 %v1276, 1.442695
    %v1297 = vpow.pop %v1296
    %v1298 = vmul.f32 %v1277, 1.442695
    %v1299 = vpow.pop %v1298
    %v1300 = vmul.f32 %v1278, 1.442695
    %v1301 = vpow.pop %v1300
    %v1302 = vmul.f32 %v1279, 1.442695
    %v1303 = vpow.pop %v1302
    %v1304 = vmul.f32 %v1280, 1.442695
    %v1305 = vpow.pop %v1304
    %v1306 = vmul.f32 %v1281, 1.442695
    %v1307 = vpow.pop %v1306
    %v1308 = vmul.f32 %v1282, 1.442695
    %v1309 = vpow.pop %v1308
    %v1310 = vmul.f32 %v1283, 1.442695
    %v1311 = vpow.pop %v1310
    %v1312 = vmul.f32 %v1284, 1.442695
    %v1313 = vpow.pop %v1312
    %v1314 = vmul.f32 %v1285, 1.442695
    %v1315 = vpow.pop %v1314
    %v1316 = vmul.f32 %v1286, 1.442695
    %v1317 = vpow.pop %v1316
    %v1318 = vmul.f32 %v1287, 1.442695
    %v1319 = vpow.pop %v1318
    %v1320 = vld [vmem:[%s9] sm:$0xff]
    %v1321 = vld [vmem:[%s9 + $0x8] sm:$0xff]
    %v1322 = vld [vmem:[%s9 + $0x10] sm:$0xff]
    %v1323 = vld [vmem:[%s9 + $0x18] sm:$0xff]
    %v1324 = vld [vmem:[%s9 + $0x20] sm:$0xff]
    %v1325 = vld [vmem:[%s9 + $0x28] sm:$0xff]
    %v1326 = vld [vmem:[%s9 + $0x30] sm:$0xff]
    %v1327 = vld [vmem:[%s9 + $0x38] sm:$0xff]
    %v1328 = vld [vmem:[%s9 + $0x40] sm:$0xff]
    %v1329 = vld [vmem:[%s9 + $0x48] sm:$0xff]
    %v1330 = vld [vmem:[%s9 + $0x50] sm:$0xff]
    %v1331 = vld [vmem:[%s9 + $0x58] sm:$0xff]
    %v1332 = vld [vmem:[%s9 + $0x60] sm:$0xff]
    %v1333 = vld [vmem:[%s9 + $0x68] sm:$0xff]
    %v1334 = vld [vmem:[%s9 + $0x70] sm:$0xff]
    %v1335 = vld [vmem:[%s9 + $0x78] sm:$0xff]
    %v1336 = vmul.f32 %v1289, %v1320
    %v1337 = vmul.f32 %v1291, %v1321
    %v1338 = vmul.f32 %v1293, %v1322
    %v1339 = vmul.f32 %v1295, %v1323
    %v1340 = vmul.f32 %v1297, %v1324
    %v1341 = vmul.f32 %v1299, %v1325
    %v1342 = vmul.f32 %v1301, %v1326
    %v1343 = vmul.f32 %v1303, %v1327
    %v1344 = vmul.f32 %v1305, %v1328
    %v1345 = vmul.f32 %v1307, %v1329
    %v1346 = vmul.f32 %v1309, %v1330
    %v1347 = vmul.f32 %v1311, %v1331
    %v1348 = vmul.f32 %v1313, %v1332
    %v1349 = vmul.f32 %v1315, %v1333
    %v1350 = vmul.f32 %v1317, %v1334
    %v1351 = vmul.f32 %v1319, %v1335
    %v1352 = vadd.f32 %v1240, %v1336
    %v1353 = vadd.f32 %v1241, %v1337
    %v1354 = vadd.f32 %v1242, %v1338
    %v1355 = vadd.f32 %v1243, %v1339
    %v1356 = vadd.f32 %v1244, %v1340
    %v1357 = vadd.f32 %v1245, %v1341
    %v1358 = vadd.f32 %v1246, %v1342
    %v1359 = vadd.f32 %v1247, %v1343
    %v1360 = vadd.f32 %v1248, %v1344
    %v1361 = vadd.f32 %v1249, %v1345
    %v1362 = vadd.f32 %v1250, %v1346
    %v1363 = vadd.f32 %v1251, %v1347
    %v1364 = vadd.f32 %v1252, %v1348
    %v1365 = vadd.f32 %v1253, %v1349
    %v1366 = vadd.f32 %v1254, %v1350
    %v1367 = vadd.f32 %v1255, %v1351
    %v1368 = vpack.c.bf16 %v1353, %v1352
    %v1369 = vpack.c.bf16 %v1355, %v1354
    %v1370 = vpack.c.bf16 %v1357, %v1356
    %v1371 = vpack.c.bf16 %v1359, %v1358
    %v1372 = vpack.c.bf16 %v1361, %v1360
    %v1373 = vpack.c.bf16 %v1363, %v1362
    %v1374 = vpack.c.bf16 %v1365, %v1364
    %v1375 = vpack.c.bf16 %v1367, %v1366
    %1376 = vst [vmem:[#allocation4] sm:$0xff] %v1368
    %1377 = vst [vmem:[#allocation4 + $0x8] sm:$0xff] %v1369
    %1378 = vst [vmem:[#allocation4 + $0x10] sm:$0xff] %v1370
    %1379 = vst [vmem:[#allocation4 + $0x18] sm:$0xff] %v1371
    %1380 = vst [vmem:[#allocation4 + $0x20] sm:$0xff] %v1372
    %1381 = vst [vmem:[#allocation4 + $0x28] sm:$0xff] %v1373
    %1382 = vst [vmem:[#allocation4 + $0x30] sm:$0xff] %v1374
    %1383 = vst [vmem:[#allocation4 + $0x38] sm:$0xff] %v1375
    %v1384 = vld [vmem:[%s4] sm:$0x1]
    %v1385 = vld [vmem:[%s5] sm:$0x1]
    %v1386 = vmul.f32 %v1385, 0.5
    %v1387 = vmul.f32 %v1386, 1.442695
    %v1388 = vpow.pop %v1387
    %v1389 = vld [vmem:[%s6] sm:$0x1]
    %v1390 = vmul.f32 %v1388, %v1389
    %v1391 = vadd.f32 %v1384, %v1390
    %1392 = vst [vmem:[#allocation3] sm:$0x1] %v1391
    %v1393 = vld [vmem:[%s10] sm:$0x1]
    %v1394 = vld [vmem:[%s11] sm:$0x1]
    %v1395 = vmul.f32 %v1394, 0.5
    %v1396 = vmul.f32 %v1395, 1.442695
    %v1397 = vpow.pop %v1396
    %v1398 = vld [vmem:[%s12] sm:$0x1]
    %v1399 = vmul.f32 %v1397, %v1398
    %v1400 = vadd.f32 %v1393, %v1399
    %1401 = vst [vmem:[#allocation5] sm:$0x1] %v1400
  $region57: #{discriminative_forward.1} parent=0 // pred_fallthru
    _
  %v1402 = vld [vmem:[%s72] sm:$0xff]
  %v1403 = vld [vmem:[%s72 + $0x8] sm:$0xff]
  %v1404 = vld [vmem:[%s72 + $0x10] sm:$0xff]
  %v1405 = vld [vmem:[%s72 + $0x18] sm:$0xff]
  %v1406 = vld [vmem:[%s72 + $0x20] sm:$0xff]
  %v1407 = vld [vmem:[%s72 + $0x28] sm:$0xff]
  %v1408 = vld [vmem:[%s72 + $0x30] sm:$0xff]
  %v1409 = vld [vmem:[%s72 + $0x38] sm:$0xff]
  %v1410 = vld [vmem:[#allocation2] sm:$0xff]
  %v1411 = vld [vmem:[#allocation2 + $0x8] sm:$0xff]
  %v1412 = vld [vmem:[#allocation2 + $0x10] sm:$0xff]
  %v1413 = vld [vmem:[#allocation2 + $0x18] sm:$0xff]
  %v1414 = vld [vmem:[#allocation2 + $0x20] sm:$0xff]
  %v1415 = vld [vmem:[#allocation2 + $0x28] sm:$0xff]
  %v1416 = vld [vmem:[#allocation2 + $0x30] sm:$0xff]
  %v1417 = vld [vmem:[#allocation2 + $0x38] sm:$0xff]
  %v1418 = vld [vmem:[#allocation2 + $0x40] sm:$0xff]
  %v1419 = vld [vmem:[#allocation2 + $0x48] sm:$0xff]
  %v1420 = vld [vmem:[#allocation2 + $0x50] sm:$0xff]
  %v1421 = vld [vmem:[#allocation2 + $0x58] sm:$0xff]
  %v1422 = vld [vmem:[#allocation2 + $0x60] sm:$0xff]
  %v1423 = vld [vmem:[#allocation2 + $0x68] sm:$0xff]
  %v1424 = vld [vmem:[#allocation2 + $0x70] sm:$0xff]
  %v1425 = vld [vmem:[#allocation2 + $0x78] sm:$0xff]
  %v1426 = vld [vmem:[#allocation2 + $0x80] sm:$0xff]
  %v1427 = vld [vmem:[#allocation2 + $0x88] sm:$0xff]
  %v1428 = vld [vmem:[#allocation2 + $0x90] sm:$0xff]
  %v1429 = vld [vmem:[#allocation2 + $0x98] sm:$0xff]
  %v1430 = vld [vmem:[#allocation2 + $0xa0] sm:$0xff]
  %v1431 = vld [vmem:[#allocation2 + $0xa8] sm:$0xff]
  %v1432 = vld [vmem:[#allocation2 + $0xb0] sm:$0xff]
  %v1433 = vld [vmem:[#allocation2 + $0xb8] sm:$0xff]
  %v1434 = vld [vmem:[#allocation2 + $0xc0] sm:$0xff]
  %v1435 = vld [vmem:[#allocation2 + $0xc8] sm:$0xff]
  %v1436 = vld [vmem:[#allocation2 + $0xd0] sm:$0xff]
  %v1437 = vld [vmem:[#allocation2 + $0xd8] sm:$0xff]
  %v1438 = vld [vmem:[#allocation2 + $0xe0] sm:$0xff]
  %v1439 = vld [vmem:[#allocation2 + $0xe8] sm:$0xff]
  %v1440 = vld [vmem:[#allocation2 + $0xf0] sm:$0xff]
  %v1441 = vld [vmem:[#allocation2 + $0xf8] sm:$0xff]
  %v1442 = vld [vmem:[#allocation2 + $0x100] sm:$0xff]
  %v1443 = vld [vmem:[#allocation2 + $0x108] sm:$0xff]
  %v1444 = vld [vmem:[#allocation2 + $0x110] sm:$0xff]
  %v1445 = vld [vmem:[#allocation2 + $0x118] sm:$0xff]
  %v1446 = vld [vmem:[#allocation2 + $0x120] sm:$0xff]
  %v1447 = vld [vmem:[#allocation2 + $0x128] sm:$0xff]
  %v1448 = vld [vmem:[#allocation2 + $0x130] sm:$0xff]
  %v1449 = vld [vmem:[#allocation2 + $0x138] sm:$0xff]
  %v1450 = vld [vmem:[#allocation2 + $0x140] sm:$0xff]
  %v1451 = vld [vmem:[#allocation2 + $0x148] sm:$0xff]
  %v1452 = vld [vmem:[#allocation2 + $0x150] sm:$0xff]
  %v1453 = vld [vmem:[#allocation2 + $0x158] sm:$0xff]
  %v1454 = vld [vmem:[#allocation2 + $0x160] sm:$0xff]
  %v1455 = vld [vmem:[#allocation2 + $0x168] sm:$0xff]
  %v1456 = vld [vmem:[#allocation2 + $0x170] sm:$0xff]
  %v1457 = vld [vmem:[#allocation2 + $0x178] sm:$0xff]
  %v1458 = vld [vmem:[#allocation2 + $0x180] sm:$0xff]
  %v1459 = vld [vmem:[#allocation2 + $0x188] sm:$0xff]
  %v1460 = vld [vmem:[#allocation2 + $0x190] sm:$0xff]
  %v1461 = vld [vmem:[#allocation2 + $0x198] sm:$0xff]
  %v1462 = vld [vmem:[#allocation2 + $0x1a0] sm:$0xff]
  %v1463 = vld [vmem:[#allocation2 + $0x1a8] sm:$0xff]
  %v1464 = vld [vmem:[#allocation2 + $0x1b0] sm:$0xff]
  %v1465 = vld [vmem:[#allocation2 + $0x1b8] sm:$0xff]
  %v1466 = vld [vmem:[#allocation2 + $0x1c0] sm:$0xff]
  %v1467 = vld [vmem:[#allocation2 + $0x1c8] sm:$0xff]
  %v1468 = vld [vmem:[#allocation2 + $0x1d0] sm:$0xff]
  %v1469 = vld [vmem:[#allocation2 + $0x1d8] sm:$0xff]
  %v1470 = vld [vmem:[#allocation2 + $0x1e0] sm:$0xff]
  %v1471 = vld [vmem:[#allocation2 + $0x1e8] sm:$0xff]
  %v1472 = vld [vmem:[#allocation2 + $0x1f0] sm:$0xff]
  %v1473 = vld [vmem:[#allocation2 + $0x1f8] sm:$0xff]
  %v1474 = vld [vmem:[#allocation3] sm:$0x1]
  %v1476 = vlaneseq
  %v1477 = vshrl.u32 %v1476, 7
  %v1478 = vsub.s32 0, %v1477
  %v1479 = vrot.slane %v1474, %v1478
  %v1489 = vunpack.c.l.b16 %v1402
  %v1490 = vunpack.c.h.b16 %v1402
  %v1491 = vunpack.c.l.b16 %v1403
  %v1492 = vunpack.c.h.b16 %v1403
  %v1493 = vunpack.c.l.b16 %v1404
  %v1494 = vunpack.c.h.b16 %v1404
  %v1495 = vunpack.c.l.b16 %v1405
  %v1496 = vunpack.c.h.b16 %v1405
  %v1497 = vunpack.c.l.b16 %v1406
  %v1498 = vunpack.c.h.b16 %v1406
  %v1499 = vunpack.c.l.b16 %v1407
  %v1500 = vunpack.c.h.b16 %v1407
  %v1501 = vunpack.c.l.b16 %v1408
  %v1502 = vunpack.c.h.b16 %v1408
  %v1503 = vunpack.c.l.b16 %v1409
  %v1504 = vunpack.c.h.b16 %v1409
  %v1505 = vpack.c.b16 %v1497, %v1489
  %v1506 = vpack.c.b16 %v1498, %v1490
  %v1507 = vpack.c.b16 %v1499, %v1491
  %v1508 = vpack.c.b16 %v1500, %v1492
  %v1509 = vpack.c.b16 %v1501, %v1493
  %v1510 = vpack.c.b16 %v1502, %v1494
  %v1511 = vpack.c.b16 %v1503, %v1495
  %v1512 = vpack.c.b16 %v1504, %v1496
  %1521 = vmatprep.subr.bf16.mxu0 0
  %1522 = vmatpush1.bf16.msra.mxu0 %v1410
  %1523 = vmatprep.subr.bf16.mxu0 0
  %1524 = vmatpush1.bf16.msra.mxu0 %v1411
  %1525 = vmatprep.subr.bf16.mxu0 0
  %1526 = vmatpush1.bf16.msra.mxu0 %v1412
  %1527 = vmatprep.subr.bf16.mxu0 0
  %1528 = vmatpush1.bf16.msra.mxu0 %v1413
  %1529 = vmatprep.subr.bf16.mxu0 0
  %1530 = vmatpush1.bf16.msra.mxu0 %v1414
  %1531 = vmatprep.subr.bf16.mxu0 0
  %1532 = vmatpush1.bf16.msra.mxu0 %v1415
  %1533 = vmatprep.subr.bf16.mxu0 0
  %1534 = vmatpush1.bf16.msra.mxu0 %v1416
  %1535 = vmatprep.subr.bf16.mxu0 0
  %1536 = vmatpush1.bf16.msra.mxu0 %v1417
  %1537 = vmatprep.subr.bf16.mxu0 0
  %1538 = vmatpush1.bf16.msra.mxu0 %v1418
  %1539 = vmatprep.subr.bf16.mxu0 0
  %1540 = vmatpush1.bf16.msra.mxu0 %v1419
  %1541 = vmatprep.subr.bf16.mxu0 0
  %1542 = vmatpush1.bf16.msra.mxu0 %v1420
  %1543 = vmatprep.subr.bf16.mxu0 0
  %1544 = vmatpush1.bf16.msra.mxu0 %v1421
  %1545 = vmatprep.subr.bf16.mxu0 0
  %1546 = vmatpush1.bf16.msra.mxu0 %v1422
  %1547 = vmatprep.subr.bf16.mxu0 0
  %1548 = vmatpush1.bf16.msra.mxu0 %v1423
  %1549 = vmatprep.subr.bf16.mxu0 0
  %1550 = vmatpush1.bf16.msra.mxu0 %v1424
  %1551 = vmatprep.subr.bf16.mxu0 0
  %1552 = vmatpush1.bf16.msra.mxu0 %v1425
  %1553 = vmatprep.mubr.bf16.mxu0 %v1506
  %1554 = vmatmul.mubr.bf16.gmra.mrb[0].mxu0 %v1505
  %v1555 = vpop.f32.mrb[0].mxu0
  %v1556 = vadd.f32 %v1479, %v1555
  %v1557 = vpop.f32.mrb[0].mxu0
  %v1558 = vpop.f32.mrb[0].mxu0
  %v1559 = vadd.f32 %v1479, %v1558
  %v1560 = vpop.f32.mrb[0].mxu0
  %1561 = vdwg.mxu0
  %1562 = vmatprep.subr.bf16.mxu0 0
  %1563 = vmatpush1.bf16.msra.mxu0 %v1426
  %1564 = vmatprep.subr.bf16.mxu0 0
  %1565 = vmatpush1.bf16.msra.mxu0 %v1427
  %1566 = vmatprep.subr.bf16.mxu0 0
  %1567 = vmatpush1.bf16.msra.mxu0 %v1428
  %1568 = vmatprep.subr.bf16.mxu0 0
  %1569 = vmatpush1.bf16.msra.mxu0 %v1429
  %1570 = vmatprep.subr.bf16.mxu0 0
  %1571 = vmatpush1.bf16.msra.mxu0 %v1430
  %1572 = vmatprep.subr.bf16.mxu0 0
  %1573 = vmatpush1.bf16.msra.mxu0 %v1431
  %1574 = vmatprep.subr.bf16.mxu0 0
  %1575 = vmatpush1.bf16.msra.mxu0 %v1432
  %1576 = vmatprep.subr.bf16.mxu0 0
  %1577 = vmatpush1.bf16.msra.mxu0 %v1433
  %1578 = vmatprep.subr.bf16.mxu0 0
  %1579 = vmatpush1.bf16.msra.mxu0 %v1434
  %1580 = vmatprep.subr.bf16.mxu0 0
  %1581 = vmatpush1.bf16.msra.mxu0 %v1435
  %1582 = vmatprep.subr.bf16.mxu0 0
  %1583 = vmatpush1.bf16.msra.mxu0 %v1436
  %1584 = vmatprep.subr.bf16.mxu0 0
  %1585 = vmatpush1.bf16.msra.mxu0 %v1437
  %1586 = vmatprep.subr.bf16.mxu0 0
  %1587 = vmatpush1.bf16.msra.mxu0 %v1438
  %1588 = vmatprep.subr.bf16.mxu0 0
  %1589 = vmatpush1.bf16.msra.mxu0 %v1439
  %1590 = vmatprep.subr.bf16.mxu0 0
  %1591 = vmatpush1.bf16.msra.mxu0 %v1440
  %1592 = vmatprep.subr.bf16.mxu0 0
  %1593 = vmatpush1.bf16.msra.mxu0 %v1441
  %1594 = vmatprep.mubr.bf16.mxu0 %v1508
  %1595 = vmatmul.mubr.bf16.gmra.mrb[0].mxu0 %v1507
  %v1596 = vpop.f32.mrb[0].mxu0
  %v1597 = vadd.f32 %v1556, %v1596
  %v1598 = vpop.f32.mrb[0].mxu0
  %v1599 = vpop.f32.mrb[0].mxu0
  %v1600 = vadd.f32 %v1559, %v1599
  %v1601 = vpop.f32.mrb[0].mxu0
  %1602 = vdwg.mxu0
  %1603 = vmatprep.subr.bf16.mxu0 0
  %1604 = vmatpush1.bf16.msra.mxu0 %v1442
  %1605 = vmatprep.subr.bf16.mxu0 0
  %1606 = vmatpush1.bf16.msra.mxu0 %v1443
  %1607 = vmatprep.subr.bf16.mxu0 0
  %1608 = vmatpush1.bf16.msra.mxu0 %v1444
  %1609 = vmatprep.subr.bf16.mxu0 0
  %1610 = vmatpush1.bf16.msra.mxu0 %v1445
  %1611 = vmatprep.subr.bf16.mxu0 0
  %1612 = vmatpush1.bf16.msra.mxu0 %v1446
  %1613 = vmatprep.subr.bf16.mxu0 0
  %1614 = vmatpush1.bf16.msra.mxu0 %v1447
  %1615 = vmatprep.subr.bf16.mxu0 0
  %1616 = vmatpush1.bf16.msra.mxu0 %v1448
  %1617 = vmatprep.subr.bf16.mxu0 0
  %1618 = vmatpush1.bf16.msra.mxu0 %v1449
  %1619 = vmatprep.subr.bf16.mxu0 0
  %1620 = vmatpush1.bf16.msra.mxu0 %v1450
  %1621 = vmatprep.subr.bf16.mxu0 0
  %1622 = vmatpush1.bf16.msra.mxu0 %v1451
  %1623 = vmatprep.subr.bf16.mxu0 0
  %1624 = vmatpush1.bf16.msra.mxu0 %v1452
  %1625 = vmatprep.subr.bf16.mxu0 0
  %1626 = vmatpush1.bf16.msra.mxu0 %v1453
  %1627 = vmatprep.subr.bf16.mxu0 0
  %1628 = vmatpush1.bf16.msra.mxu0 %v1454
  %1629 = vmatprep.subr.bf16.mxu0 0
  %1630 = vmatpush1.bf16.msra.mxu0 %v1455
  %1631 = vmatprep.subr.bf16.mxu0 0
  %1632 = vmatpush1.bf16.msra.mxu0 %v1456
  %1633 = vmatprep.subr.bf16.mxu0 0
  %1634 = vmatpush1.bf16.msra.mxu0 %v1457
  %1635 = vmatprep.mubr.bf16.mxu0 %v1510
  %1636 = vmatmul.mubr.bf16.gmra.mrb[0].mxu0 %v1509
  %v1637 = vpop.f32.mrb[0].mxu0
  %v1638 = vadd.f32 %v1597, %v1637
  %v1639 = vpop.f32.mrb[0].mxu0
  %v1640 = vpop.f32.mrb[0].mxu0
  %v1641 = vadd.f32 %v1600, %v1640
  %v1642 = vpop.f32.mrb[0].mxu0
  %1643 = vdwg.mxu0
  %1644 = vmatprep.subr.bf16.mxu0 0
  %1645 = vmatpush1.bf16.msra.mxu0 %v1458
  %1646 = vmatprep.subr.bf16.mxu0 0
  %1647 = vmatpush1.bf16.msra.mxu0 %v1459
  %1648 = vmatprep.subr.bf16.mxu0 0
  %1649 = vmatpush1.bf16.msra.mxu0 %v1460
  %1650 = vmatprep.subr.bf16.mxu0 0
  %1651 = vmatpush1.bf16.msra.mxu0 %v1461
  %1652 = vmatprep.subr.bf16.mxu0 0
  %1653 = vmatpush1.bf16.msra.mxu0 %v1462
  %1654 = vmatprep.subr.bf16.mxu0 0
  %1655 = vmatpush1.bf16.msra.mxu0 %v1463
  %1656 = vmatprep.subr.bf16.mxu0 0
  %1657 = vmatpush1.bf16.msra.mxu0 %v1464
  %1658 = vmatprep.subr.bf16.mxu0 0
  %1659 = vmatpush1.bf16.msra.mxu0 %v1465
  %1660 = vmatprep.subr.bf16.mxu0 0
  %1661 = vmatpush1.bf16.msra.mxu0 %v1466
  %1662 = vmatprep.subr.bf16.mxu0 0
  %1663 = vmatpush1.bf16.msra.mxu0 %v1467
  %1664 = vmatprep.subr.bf16.mxu0 0
  %1665 = vmatpush1.bf16.msra.mxu0 %v1468
  %1666 = vmatprep.subr.bf16.mxu0 0
  %1667 = vmatpush1.bf16.msra.mxu0 %v1469
  %1668 = vmatprep.subr.bf16.mxu0 0
  %1669 = vmatpush1.bf16.msra.mxu0 %v1470
  %1670 = vmatprep.subr.bf16.mxu0 0
  %1671 = vmatpush1.bf16.msra.mxu0 %v1471
  %1672 = vmatprep.subr.bf16.mxu0 0
  %1673 = vmatpush1.bf16.msra.mxu0 %v1472
  %1674 = vmatprep.subr.bf16.mxu0 0
  %1675 = vmatpush1.bf16.msra.mxu0 %v1473
  %1676 = vmatprep.mubr.bf16.mxu0 %v1512
  %1677 = vmatmul.mubr.bf16.gmra.mrb[0].mxu0 %v1511
  %v1678 = vpop.f32.mrb[0].mxu0
  %v1679 = vadd.f32 %v1638, %v1678
  %v1680 = vpop.f32.mrb[0].mxu0
  %v1681 = vpop.f32.mrb[0].mxu0
  %v1682 = vadd.f32 %v1641, %v1681
  %v1683 = vpop.f32.mrb[0].mxu0
  %1684 = vdwg.mxu0
  %v1685 = vmax.f32 %v1679, 0.0
  %v1686 = vmax.f32 %v1682, 0.0
  %v1687 = vpack.c.bf16 %v1686, %v1685
  %v1688 = vld [vmem:[#allocation4] sm:$0xff]
  %v1689 = vld [vmem:[#allocation4 + $0x8] sm:$0xff]
  %v1690 = vld [vmem:[#allocation4 + $0x10] sm:$0xff]
  %v1691 = vld [vmem:[#allocation4 + $0x18] sm:$0xff]
  %v1692 = vld [vmem:[#allocation4 + $0x20] sm:$0xff]
  %v1693 = vld [vmem:[#allocation4 + $0x28] sm:$0xff]
  %v1694 = vld [vmem:[#allocation4 + $0x30] sm:$0xff]
  %v1695 = vld [vmem:[#allocation4 + $0x38] sm:$0xff]
  %v1696 = vld [vmem:[#allocation5] sm:$0x1]
  %v1698 = vlaneseq
  %v1699 = vshrl.u32 %v1698, 7
  %v1700 = vsub.s32 0, %v1699
  %v1701 = vrot.slane %v1696, %v1700
  %1703 = vmatprep.subr.bf16.mxu0 0
  %1704 = vmatpush1.bf16.msra.mxu0 %v1688
  %1705 = vmatprep.subr.bf16.mxu0 0
  %1706 = vmatpush1.bf16.msra.mxu0 %v1689
  %1707 = vmatprep.subr.bf16.mxu0 0
  %1708 = vmatpush1.bf16.msra.mxu0 %v1690
  %1709 = vmatprep.subr.bf16.mxu0 0
  %1710 = vmatpush1.bf16.msra.mxu0 %v1691
  %1711 = vmatprep.subr.bf16.mxu0 0
  %1712 = vmatpush1.bf16.msra.mxu0 %v1692
  %1713 = vmatprep.subr.bf16.mxu0 0
  %1714 = vmatpush1.bf16.msra.mxu0 %v1693
  %1715 = vmatprep.subr.bf16.mxu0 0
  %1716 = vmatpush1.bf16.msra.mxu0 %v1694
  %1717 = vmatprep.subr.bf16.mxu0 0
  %1718 = vmatpush1.bf16.msra.mxu0 %v1695
  %1719 = vmatprep.subr.bf16.mxu0 0
  %1720 = vmatpush1.bf16.msra.mxu0 0
  %1721 = vmatprep.subr.bf16.mxu0 0
  %1722 = vmatpush1.bf16.msra.mxu0 0
  %1723 = vmatprep.subr.bf16.mxu0 0
  %1724 = vmatpush1.bf16.msra.mxu0 0
  %1725 = vmatprep.subr.bf16.mxu0 0
  %1726 = vmatpush1.bf16.msra.mxu0 0
  %1727 = vmatprep.subr.bf16.mxu0 0
  %1728 = vmatpush1.bf16.msra.mxu0 0
  %1729 = vmatprep.subr.bf16.mxu0 0
  %1730 = vmatpush1.bf16.msra.mxu0 0
  %1731 = vmatprep.subr.bf16.mxu0 0
  %1732 = vmatpush1.bf16.msra.mxu0 0
  %1733 = vmatprep.subr.bf16.mxu0 0
  %1734 = vmatpush1.bf16.msra.mxu0 0
  %1735 = vmatprep.mubr.bf16.mxu0 0
  %1736 = vmatmul.mubr.bf16.gmra.mrb[0].mxu0 %v1687
  %v1737 = vpop.f32.mrb[0].mxu0
  %v1738 = vadd.f32 %v1701, %v1737
  %v1739 = vpop.f32.mrb[0].mxu0
  %v1740 = vpop.f32.mrb[0].mxu0
  %v1741 = vadd.f32 %v1701, %v1740
  %v1742 = vpop.f32.mrb[0].mxu0
  %1743 = vdwg.mxu0
  %v1744 = vlaneseq
  %v1745 = vand.u32 %v1744, 127
  %vm1746 = vcmp.lt.s32.totalorder %v1745, 10
  %v1747 = vsel %vm1746, %v1738, -1e+30
  %v1748 = vsel %vm1746, %v1741, -1e+30
  %1749 = vmax.xlane.f32.xlu0 %v1747
  %v1750 = vpop.xlane.xlu0 %1749
  %1751 = vmax.xlane.f32.xlu0 %v1748
  %v1752 = vpop.xlane.xlu0 %1751
  %v1753 = vsub.f32 %v1747, %v1750
  %v1754 = vsub.f32 %v1748, %v1752
  %v1755 = vmul.f32 %v1753, 1.442695
  %v1756 = vpow.pop %v1755
  %v1757 = vmul.f32 %v1754, 1.442695
  %v1758 = vpow.pop %v1757
  %1759 = vadd.xlane.f32.xlu0 %v1756
  %v1760 = vpop.xlane.xlu0 %1759
  %1761 = vadd.xlane.f32.xlu0 %v1758
  %v1762 = vpop.xlane.xlu0 %1761
  %v1763 = vrcp.pop %v1760
  %v1764 = vrcp.pop %v1762
  %v1765 = vmul.f32 %v1756, %v1763
  %v1766 = vmul.f32 %v1758, %v1764
  %1767 = vst [vmem:[%s80] sm:$0xff] %v1765
  %1768 = vst [vmem:[%s80 + $0x8] sm:$0xff] %v1766
  %s1769 = sadd.s32 0, 0
  %s1770 = smul.u32 2, %s1769
  %p1771 = scmp.lt.s32.totalorder %s1770, 1
  %s1772 = scalar_select %p1771, %s1770, 1
  %s1773 = smul.addr %s1772, 8
  %s1774 = scalar_lea.vmem %s13, %s1773
  // Predicated region
  $region58: #{discriminative_forward.1} parent=0 // pred_check
    _
  $region59: #{discriminative_forward.1} parent=0 // pred_check_branch
    %1776 = sbr.rel (0) target = $region61
  $region60: #{discriminative_forward.1} parent=0 // pred_region
    %s1777 = sadd.s32 0, 0
    %s1778 = smul.u32 2, %s1777
  $region61: #{discriminative_forward.1} parent=0 // pred_fallthru
    _
  // Predicated region
  $region62: #{discriminative_forward.1} parent=0 // pred_check
    _
  $region63: #{discriminative_forward.1} parent=0 // pred_check_branch
    %1780 = sbr.rel (0) target = $region65
  $region64: #{discriminative_forward.1} parent=0 // pred_region
    %s1781 = sadd.s32 0, 0
    %s1782 = smul.u32 2, %s1781
    %p1783 = scmp.lt.s32.totalorder %s1782, 1
    %s1784 = scalar_select %p1783, %s1782, 1
    %s1785 = smul.addr %s1784, 8
    %s1786 = scalar_lea.vmem %s13, %s1785
  $region65: #{discriminative_forward.1} parent=0 // pred_fallthru
    _

</llo_original>
